<compile_context>
chip_gen: v7x
topology: tpu7x:2x2x1
jax: 0.10.0
libtpu: 0.0.40
codegen_flags: <defaults>
</compile_context>

<pallas_src>
import numpy as np
import jax
import jax.numpy as jnp
from jax import lax
from jax.experimental import pallas as pl
from jax.experimental.pallas import tpu as pltpu

PSP_SIZES = (1, 3, 6, 8)
NEG_BIG = -1e30


def adaptive_pool_matrix(H, W, sizes=PSP_SIZES):
    """Exact PyTorch AdaptiveAvgPool2d, as a (sum(s*s), H*W) averaging matrix."""
    rows = []
    for s in sizes:
        for i in range(s):
            h0 = (i * H) // s
            h1 = -(-((i + 1) * H) // s)          # ceil
            for j in range(s):
                w0 = (j * W) // s
                w1 = -(-((j + 1) * W) // s)      # ceil
                m = np.zeros((H, W), dtype=np.float32)
                m[h0:h1, w0:w1] = 1.0 / float((h1 - h0) * (w1 - w0))
                rows.append(m.reshape(-1))
    return np.stack(rows, axis=0)                # (S, H*W)


def afnb2_kernel(xl_ref, xh_ref, pt_ref, negmask_ref,
                 wk_ref, bk_ref,      # key branch (BN folded), channel-major
                 wq_ref, bq_ref,      # query branch (BN + ck**-0.5 folded)
                 wv_ref, bv_ref,      # value branch
                 ww_ref, bw_ref,      # output 1x1 conv W
                 out_ref):
    f32 = jnp.float32
    xl = xl_ref[0]                    # (Cl, HWl)   channel-major, lane = HWl
    xh = xh_ref[0]                    # (Ch, HW)
    pt = pt_ref[...]                  # (HWl, S_pad) pooling matrix (transposed, zero-padded)

    # ---- value branch: pool first (linear path, pool rows sum to 1), then project.
    xl_psp = jnp.dot(xl, pt, preferred_element_type=f32)                       # (Cl, S_pad)
    value_psp = jnp.dot(wv_ref[...], xl_psp, preferred_element_type=f32) \
        + bv_ref[...]                                                          # (Cv, S_pad)
    # Fold the output 1x1 conv into the PSP bins (S instead of HW tokens).
    vw = jnp.dot(ww_ref[...], value_psp, preferred_element_type=f32)           # (Cout, S_pad)

    # ---- key branch: 1x1 conv + BN(folded) + ReLU at full res, then pool.
    key = jnp.maximum(
        jnp.dot(wk_ref[...], xl, preferred_element_type=f32) + bk_ref[...], 0.0)  # (Ck, HWl)
    key_psp = jnp.dot(key, pt, preferred_element_type=f32)                     # (Ck, S_pad)

    # ---- query branch: 1x1 conv + BN(folded) + ReLU (ck**-0.5 already folded in).
    query = jnp.maximum(
        jnp.dot(wq_ref[...], xh, preferred_element_type=f32) + bq_ref[...], 0.0)  # (Ck, HW)

    # ---- attention over PSP bins: sim (HW, S_pad) = query^T . key_psp (contract channel).
    sim = lax.dot_general(query, key_psp, (((0,), (0,)), ((), ())),
                          preferred_element_type=f32)                          # (HW, S_pad)
    sim = sim + negmask_ref[...]                       # additive mask for padded PSP bins
    sim = sim - jnp.max(sim, axis=-1, keepdims=True)
    p = jnp.exp(sim)
    attn = p * pl.reciprocal(jnp.sum(p, axis=-1, keepdims=True), approx=True)  # (HW, S_pad)

    # ---- context (Cout, HW) = vw . attn^T (contract S_pad), then bias + residual.
    context = lax.dot_general(vw, attn, (((1,), (1,)), ((), ())),
                              preferred_element_type=f32)                      # (Cout, HW)
    out_ref[0] = (context + bw_ref[...] + xh).astype(out_ref.dtype)


def afnb2_forward(low_nchw, high_nchw, params):
    N, Cl, Hl, Wl = low_nchw.shape
    _, Ch, H, W = high_nchw.shape
    HWl, HW = Hl * Wl, H * W
    S = sum(s * s for s in PSP_SIZES)
    S_pad = ((S + 127) // 128) * 128

    # Channel-major token layout straight from NCHW (no transposes).
    xl = low_nchw.reshape(N, Cl, HWl)
    xh = high_nchw.reshape(N, Ch, HW)

    # Pooling matrix, transposed to (HWl, S_pad) with zero-padded extra bins.
    P = adaptive_pool_matrix(Hl, Wl)                       # (S, HWl) numpy
    Pt_np = np.zeros((HWl, S_pad), dtype=np.float32)
    Pt_np[:, :S] = P.T
    Pt = jnp.asarray(Pt_np)

    # Additive softmax mask for the padded PSP bins: 0 for valid, -1e30 for pad.
    negmask_np = np.zeros((1, S_pad), dtype=np.float32)
    negmask_np[0, S:] = NEG_BIG
    negmask = jnp.asarray(negmask_np)

    (wv, bv, wk, bk, ks, kb, wq, bq, qs, qb, ww, bw) = params
    Ck = wk.shape[1]
    Cout = ww.shape[1]
    scale = Ck ** -0.5

    # Fold BN(eval) into the 1x1 convs, fold ck**-0.5 into the query branch
    # (valid: ReLU is positively homogeneous, scale > 0), and go channel-major.
    wk_f = (wk * ks).T                                     # (Ck, Cl)
    bk_f = (bk * ks + kb).T                                # (Ck, 1)
    wq_f = ((wq * qs) * scale).T                           # (Ck, Ch)
    bq_f = ((bq * qs + qb) * scale).T                      # (Ck, 1)
    wv_t = wv.T                                            # (Cv, Cl)
    bv_t = bv.T                                            # (Cv, 1)
    ww_t = ww.T                                            # (Cout, Cv)
    bw_t = bw.T                                            # (Cout, 1)

    per_n = lambda n: (n, 0, 0)
    full2 = lambda n: (0, 0)

    out = pl.pallas_call(
        afnb2_kernel,
        out_shape=jax.ShapeDtypeStruct((N, Cout, HW), jnp.float32),
        grid_spec=pltpu.PrefetchScalarGridSpec(
            num_scalar_prefetch=0,
            grid=(N,),
            in_specs=[
                pl.BlockSpec((1, Cl, HWl), per_n),
                pl.BlockSpec((1, Ch, HW), per_n),
                pl.BlockSpec((HWl, S_pad), full2),
                pl.BlockSpec((1, S_pad), full2),
                pl.BlockSpec(wk_f.shape, full2), pl.BlockSpec(bk_f.shape, full2),
                pl.BlockSpec(wq_f.shape, full2), pl.BlockSpec(bq_f.shape, full2),
                pl.BlockSpec(wv_t.shape, full2), pl.BlockSpec(bv_t.shape, full2),
                pl.BlockSpec(ww_t.shape, full2), pl.BlockSpec(bw_t.shape, full2),
            ],
            out_specs=pl.BlockSpec((1, Cout, HW), per_n),
        ),
        compiler_params=pltpu.CompilerParams(
            dimension_semantics=("parallel",)),
    )(xl, xh, Pt, negmask, wk_f, bk_f, wq_f, bq_f, wv_t, bv_t, ww_t, bw_t)

    # Output is already channel-major: (N, Cout, HW) -> NCHW via reshape only.
    return out.reshape(N, Cout, H, W)


def afnb2_reference(low_nchw, high_nchw, params):
    """Pure-JAX reference following the PyTorch forward exactly (BN in eval mode)."""
    N, Cl, Hl, Wl = low_nchw.shape
    _, Ch, H, W = high_nchw.shape
    P = jnp.asarray(adaptive_pool_matrix(Hl, Wl))                    # (S, HWl)
    xl = jnp.transpose(low_nchw.reshape(N, Cl, Hl * Wl), (0, 2, 1))  # (N, HWl, Cl)
    xh = jnp.transpose(high_nchw.reshape(N, Ch, H * W), (0, 2, 1))   # (N, HW, Ch)
    wv, bv, wk, bk, ks, kb, wq, bq, qs, qb, ww, bw = params
    value = xl @ wv + bv
    value_psp = jnp.einsum('sp,npc->nsc', P, value)
    key = jnp.maximum((xl @ wk + bk) * ks + kb, 0.0)
    key_psp = jnp.einsum('sp,npc->nsc', P, key)
    query = jnp.maximum((xh @ wq + bq) * qs + qb, 0.0)
    sim = jnp.einsum('nqc,nsc->nqs', query, key_psp) * (wk.shape[1] ** -0.5)
    attn = jax.nn.softmax(sim, axis=-1)
    context = jnp.einsum('nqs,nsc->nqc', attn, value_psp) @ ww + bw
    out = context + xh                                               # (N, HW, Cout)
    return jnp.transpose(out, (0, 2, 1)).reshape(N, -1, H, W)


def make_params(key, low_in, high_in, out_ch, key_ch, value_ch):
    """Deterministic parameter init. 1x1 conv weights stored as (Cin, Cout).
    BatchNorm (eval mode) expressed as per-channel scale/bias (folded later)."""
    ks = jax.random.split(key, 16)
    eps = 1e-5

    def bn_fold(kg, kb_, km, kv, c):
        gamma = 1.0 + 0.1 * jax.random.normal(kg, (1, c), jnp.float32)
        beta = 0.1 * jax.random.normal(kb_, (1, c), jnp.float32)
        mean = 0.1 * jax.random.normal(km, (1, c), jnp.float32)
        var = jnp.abs(jax.random.normal(kv, (1, c), jnp.float32)) + 0.5
        scale = gamma / jnp.sqrt(var + eps)
        bias = beta - mean * scale
        return scale, bias

    wv = 0.1 * jax.random.normal(ks[0], (low_in, value_ch), jnp.float32)
    bv = 0.1 * jax.random.normal(ks[1], (1, value_ch), jnp.float32)
    wk = 0.1 * jax.random.normal(ks[2], (low_in, key_ch), jnp.float32)
    bk = 0.1 * jax.random.normal(ks[3], (1, key_ch), jnp.float32)
    k_scale, k_bias = bn_fold(ks[4], ks[5], ks[6], ks[7], key_ch)
    wq = 0.1 * jax.random.normal(ks[8], (high_in, key_ch), jnp.float32)
    bq = 0.1 * jax.random.normal(ks[9], (1, key_ch), jnp.float32)
    q_scale, q_bias = bn_fold(ks[10], ks[11], ks[12], ks[13], key_ch)
    ww = 0.1 * jax.random.normal(ks[14], (value_ch, out_ch), jnp.float32)
    bw = 0.1 * jax.random.normal(ks[15], (1, out_ch), jnp.float32)
    return (wv, bv, wk, bk, k_scale, k_bias, wq, bq, q_scale, q_bias, ww, bw)


if __name__ == "__main__":
    # AFNB2(low_in_channels=8, high_in_channels=16, out_channels=16,
    #       key_channels=8, value_channels=8) -- out_channels must equal
    #       high_in_channels for the residual add in AFNB2.forward.
    N, C_LOW, C_HIGH, C_OUT, C_KEY, C_VAL = 2, 8, 16, 16, 8, 8
    HL = WL = 16   # low-feature spatial
    H = W = 16     # high-feature spatial

    key = jax.random.PRNGKey(0)
    k_low, k_high, k_par = jax.random.split(key, 3)
    low_feats = jax.random.normal(k_low, (N, C_LOW, HL, WL), jnp.float32)
    high_feats = jax.random.normal(k_high, (N, C_HIGH, H, W), jnp.float32)
    params = make_params(k_par, C_LOW, C_HIGH, C_OUT, C_KEY, C_VAL)

    out = afnb2_forward(low_feats, high_feats, params)
    jax.block_until_ready(out)
    assert out.shape == (N, C_OUT, H, W)
    assert bool(jnp.all(jnp.isfinite(out)))

    ref = afnb2_reference(low_feats, high_feats, params)
    max_err = float(jnp.max(jnp.abs(out - ref)))
    assert max_err < 1e-2, f"mismatch vs reference: max abs err {max_err}"
    print("KERNEL_OK")
</pallas_src>

<mosaic_0001>
module attributes {stable_mosaic.version = 11 : i64} {
  func.func @afnb2_kernel(%arg0: i32, %arg1: memref<1x8x256xf32, #tpu.memory_space<vmem>>, %arg2: memref<1x16x256xf32, #tpu.memory_space<vmem>>, %arg3: memref<256x128xf32, #tpu.memory_space<vmem>>, %arg4: memref<1x128xf32, #tpu.memory_space<vmem>>, %arg5: memref<8x8xf32, #tpu.memory_space<vmem>>, %arg6: memref<8x1xf32, #tpu.memory_space<vmem>>, %arg7: memref<8x16xf32, #tpu.memory_space<vmem>>, %arg8: memref<8x1xf32, #tpu.memory_space<vmem>>, %arg9: memref<8x8xf32, #tpu.memory_space<vmem>>, %arg10: memref<8x1xf32, #tpu.memory_space<vmem>>, %arg11: memref<16x8xf32, #tpu.memory_space<vmem>>, %arg12: memref<16x1xf32, #tpu.memory_space<vmem>>, %arg13: memref<1x16x256xf32, #tpu.memory_space<vmem>>) attributes {dimension_semantics = [#tpu.dimension_semantics<parallel>], iteration_bounds = array<i64: 2>, scalar_prefetch = 0 : i64, scratch_operands = 0 : i64, tpu.core_type = #tpu.core_type<tc>, window_params = [{transform_indices = @transform_0, window_bounds = array<i64: 1, 8, 256>}, {transform_indices = @transform_1, window_bounds = array<i64: 1, 16, 256>}, {pipeline_mode = #tpu.pipeline_mode<synchronous>, transform_indices = @transform_2, window_bounds = array<i64: 256, 128>}, {pipeline_mode = #tpu.pipeline_mode<synchronous>, transform_indices = @transform_3, window_bounds = array<i64: 1, 128>}, {pipeline_mode = #tpu.pipeline_mode<synchronous>, transform_indices = @transform_4, window_bounds = array<i64: 8, 8>}, {pipeline_mode = #tpu.pipeline_mode<synchronous>, transform_indices = @transform_5, window_bounds = array<i64: 8, 1>}, {pipeline_mode = #tpu.pipeline_mode<synchronous>, transform_indices = @transform_6, window_bounds = array<i64: 8, 16>}, {pipeline_mode = #tpu.pipeline_mode<synchronous>, transform_indices = @transform_7, window_bounds = array<i64: 8, 1>}, {pipeline_mode = #tpu.pipeline_mode<synchronous>, transform_indices = @transform_8, window_bounds = array<i64: 8, 8>}, {pipeline_mode = #tpu.pipeline_mode<synchronous>, transform_indices = @transform_9, window_bounds = array<i64: 8, 1>}, {pipeline_mode = #tpu.pipeline_mode<synchronous>, transform_indices = @transform_10, window_bounds = array<i64: 16, 8>}, {pipeline_mode = #tpu.pipeline_mode<synchronous>, transform_indices = @transform_11, window_bounds = array<i64: 16, 1>}, {transform_indices = @transform_12, window_bounds = array<i64: 1, 16, 256>}]} {
    %c0 = arith.constant 0 : index
    %c0_0 = arith.constant 0 : index
    %c0_1 = arith.constant 0 : index
    %0 = vector.load %arg1[%c0, %c0_0, %c0_1] : memref<1x8x256xf32, #tpu.memory_space<vmem>>, vector<1x8x256xf32>
    %1 = vector.shape_cast %0 : vector<1x8x256xf32> to vector<8x256xf32>
    %c0_2 = arith.constant 0 : index
    %c0_3 = arith.constant 0 : index
    %c0_4 = arith.constant 0 : index
    %2 = vector.load %arg2[%c0_2, %c0_3, %c0_4] : memref<1x16x256xf32, #tpu.memory_space<vmem>>, vector<1x16x256xf32>
    %3 = vector.shape_cast %2 : vector<1x16x256xf32> to vector<16x256xf32>
    %c0_5 = arith.constant 0 : index
    %c0_6 = arith.constant 0 : index
    %4 = vector.load %arg3[%c0_5, %c0_6] : memref<256x128xf32, #tpu.memory_space<vmem>>, vector<256x128xf32>
    %cst = arith.constant dense<0.000000e+00> : vector<8x128xf32>
    %5 = tpu.matmul %1, %4, %cst {dimension_numbers = #tpu.dot_dimension_numbers<[1], [0], [0], [1], [0, 0, 1, 1], [], []>} : vector<8x256xf32>, vector<256x128xf32>, vector<8x128xf32> -> vector<8x128xf32>
    %c0_7 = arith.constant 0 : index
    %c0_8 = arith.constant 0 : index
    %6 = vector.load %arg9[%c0_7, %c0_8] : memref<8x8xf32, #tpu.memory_space<vmem>>, vector<8x8xf32>
    %cst_9 = arith.constant dense<0.000000e+00> : vector<8x128xf32>
    %7 = tpu.matmul %6, %5, %cst_9 {dimension_numbers = #tpu.dot_dimension_numbers<[1], [0], [0], [1], [0, 0, 1, 1], [], []>} : vector<8x8xf32>, vector<8x128xf32>, vector<8x128xf32> -> vector<8x128xf32>
    %c0_10 = arith.constant 0 : index
    %c0_11 = arith.constant 0 : index
    %8 = vector.load %arg10[%c0_10, %c0_11] : memref<8x1xf32, #tpu.memory_space<vmem>>, vector<8x1xf32>
    %9 = vector.broadcast %8 : vector<8x1xf32> to vector<8x128xf32>
    %10 = arith.addf %7, %9 : vector<8x128xf32>
    %c0_12 = arith.constant 0 : index
    %c0_13 = arith.constant 0 : index
    %11 = vector.load %arg11[%c0_12, %c0_13] : memref<16x8xf32, #tpu.memory_space<vmem>>, vector<16x8xf32>
    %cst_14 = arith.constant dense<0.000000e+00> : vector<16x128xf32>
    %12 = tpu.matmul %11, %10, %cst_14 {dimension_numbers = #tpu.dot_dimension_numbers<[1], [0], [0], [1], [0, 0, 1, 1], [], []>} : vector<16x8xf32>, vector<8x128xf32>, vector<16x128xf32> -> vector<16x128xf32>
    %c0_15 = arith.constant 0 : index
    %c0_16 = arith.constant 0 : index
    %13 = vector.load %arg5[%c0_15, %c0_16] : memref<8x8xf32, #tpu.memory_space<vmem>>, vector<8x8xf32>
    %cst_17 = arith.constant dense<0.000000e+00> : vector<8x256xf32>
    %14 = tpu.matmul %13, %1, %cst_17 {dimension_numbers = #tpu.dot_dimension_numbers<[1], [0], [0], [1], [0, 0, 1, 1], [], []>} : vector<8x8xf32>, vector<8x256xf32>, vector<8x256xf32> -> vector<8x256xf32>
    %c0_18 = arith.constant 0 : index
    %c0_19 = arith.constant 0 : index
    %15 = vector.load %arg6[%c0_18, %c0_19] : memref<8x1xf32, #tpu.memory_space<vmem>>, vector<8x1xf32>
    %16 = vector.broadcast %15 : vector<8x1xf32> to vector<8x256xf32>
    %17 = arith.addf %14, %16 : vector<8x256xf32>
    %cst_20 = arith.constant 0.000000e+00 : f32
    %18 = vector.broadcast %cst_20 : f32 to vector<8x256xf32>
    %19 = arith.maximumf %17, %18 : vector<8x256xf32>
    %cst_21 = arith.constant dense<0.000000e+00> : vector<8x128xf32>
    %20 = tpu.matmul %19, %4, %cst_21 {dimension_numbers = #tpu.dot_dimension_numbers<[1], [0], [0], [1], [0, 0, 1, 1], [], []>} : vector<8x256xf32>, vector<256x128xf32>, vector<8x128xf32> -> vector<8x128xf32>
    %c0_22 = arith.constant 0 : index
    %c0_23 = arith.constant 0 : index
    %21 = vector.load %arg7[%c0_22, %c0_23] : memref<8x16xf32, #tpu.memory_space<vmem>>, vector<8x16xf32>
    %cst_24 = arith.constant dense<0.000000e+00> : vector<8x256xf32>
    %22 = tpu.matmul %21, %3, %cst_24 {dimension_numbers = #tpu.dot_dimension_numbers<[1], [0], [0], [1], [0, 0, 1, 1], [], []>} : vector<8x16xf32>, vector<16x256xf32>, vector<8x256xf32> -> vector<8x256xf32>
    %c0_25 = arith.constant 0 : index
    %c0_26 = arith.constant 0 : index
    %23 = vector.load %arg8[%c0_25, %c0_26] : memref<8x1xf32, #tpu.memory_space<vmem>>, vector<8x1xf32>
    %24 = vector.broadcast %23 : vector<8x1xf32> to vector<8x256xf32>
    %25 = arith.addf %22, %24 : vector<8x256xf32>
    %cst_27 = arith.constant 0.000000e+00 : f32
    %26 = vector.broadcast %cst_27 : f32 to vector<8x256xf32>
    %27 = arith.maximumf %25, %26 : vector<8x256xf32>
    %cst_28 = arith.constant dense<0.000000e+00> : vector<256x128xf32>
    %28 = tpu.matmul %27, %20, %cst_28 {dimension_numbers = #tpu.dot_dimension_numbers<[0], [0], [1], [1], [0, 1, 1, 1], [], []>} : vector<8x256xf32>, vector<8x128xf32>, vector<256x128xf32> -> vector<256x128xf32>
    %c0_29 = arith.constant 0 : index
    %c0_30 = arith.constant 0 : index
    %29 = vector.load %arg4[%c0_29, %c0_30] : memref<1x128xf32, #tpu.memory_space<vmem>>, vector<1x128xf32>
    %30 = vector.broadcast %29 : vector<1x128xf32> to vector<256x128xf32>
    %31 = arith.addf %28, %30 : vector<256x128xf32>
    %cst_31 = arith.constant dense<0xFF800000> : vector<256xf32>
    %32 = vector.multi_reduction <maximumf>, %31, %cst_31 [1] : vector<256x128xf32> to vector<256xf32>
    %33 = vector.shape_cast %32 : vector<256xf32> to vector<256x1xf32>
    %34 = vector.broadcast %33 : vector<256x1xf32> to vector<256x128xf32>
    %35 = arith.subf %31, %34 : vector<256x128xf32>
    %36 = math.exp %35 : vector<256x128xf32>
    %cst_32 = arith.constant dense<0.000000e+00> : vector<256xf32>
    %37 = vector.multi_reduction <add>, %36, %cst_32 [1] : vector<256x128xf32> to vector<256xf32>
    %38 = vector.shape_cast %37 : vector<256xf32> to vector<256x1xf32>
    %39 = tpu.reciprocal %38 {approx = true} : vector<256x1xf32> -> vector<256x1xf32>
    %40 = vector.broadcast %39 : vector<256x1xf32> to vector<256x128xf32>
    %41 = arith.mulf %36, %40 : vector<256x128xf32>
    %cst_33 = arith.constant dense<0.000000e+00> : vector<16x256xf32>
    %42 = tpu.matmul %12, %41, %cst_33 {dimension_numbers = #tpu.dot_dimension_numbers<[1], [1], [0], [0], [0, 0, 1, 0], [], []>} : vector<16x128xf32>, vector<256x128xf32>, vector<16x256xf32> -> vector<16x256xf32>
    %c0_34 = arith.constant 0 : index
    %c0_35 = arith.constant 0 : index
    %43 = vector.load %arg12[%c0_34, %c0_35] : memref<16x1xf32, #tpu.memory_space<vmem>>, vector<16x1xf32>
    %44 = vector.broadcast %43 : vector<16x1xf32> to vector<16x256xf32>
    %45 = arith.addf %42, %44 : vector<16x256xf32>
    %46 = arith.addf %45, %3 : vector<16x256xf32>
    %c0_36 = arith.constant 0 : index
    %c0_37 = arith.constant 0 : index
    %c0_38 = arith.constant 0 : index
    %47 = vector.load %arg13[%c0_36, %c0_37, %c0_38] : memref<1x16x256xf32, #tpu.memory_space<vmem>>, vector<1x16x256xf32>
    %48 = vector.shape_cast %47 : vector<1x16x256xf32> to vector<16x256xf32>
    %49 = vector.shape_cast %46 : vector<16x256xf32> to vector<1x16x256xf32>
    tpu.vector_store %arg13[%c0_36, %c0_37, %c0_38], %49 {strides = array<i32>} : memref<1x16x256xf32, #tpu.memory_space<vmem>>, vector<1x16x256xf32>,
    return
  }
  func.func @transform_0(%arg0: i32) -> (i32, i32, i32) {
    %c0_i32 = arith.constant 0 : i32
    %c0_i32_0 = arith.constant 0 : i32
    %c0_i32_1 = arith.constant 0 : i32
    return %arg0, %c0_i32, %c0_i32_0 : i32, i32, i32
  }
  func.func @transform_1(%arg0: i32) -> (i32, i32, i32) {
    %c0_i32 = arith.constant 0 : i32
    %c0_i32_0 = arith.constant 0 : i32
    %c0_i32_1 = arith.constant 0 : i32
    return %arg0, %c0_i32, %c0_i32_0 : i32, i32, i32
  }
  func.func @transform_2(%arg0: i32) -> (i32, i32) {
    %c0_i32 = arith.constant 0 : i32
    %c0_i32_0 = arith.constant 0 : i32
    %c0_i32_1 = arith.constant 0 : i32
    return %c0_i32, %c0_i32_0 : i32, i32
  }
  func.func @transform_3(%arg0: i32) -> (i32, i32) {
    %c0_i32 = arith.constant 0 : i32
    %c0_i32_0 = arith.constant 0 : i32
    %c0_i32_1 = arith.constant 0 : i32
    return %c0_i32, %c0_i32_0 : i32, i32
  }
  func.func @transform_4(%arg0: i32) -> (i32, i32) {
    %c0_i32 = arith.constant 0 : i32
    %c0_i32_0 = arith.constant 0 : i32
    %c0_i32_1 = arith.constant 0 : i32
    return %c0_i32, %c0_i32_0 : i32, i32
  }
  func.func @transform_5(%arg0: i32) -> (i32, i32) {
    %c0_i32 = arith.constant 0 : i32
    %c0_i32_0 = arith.constant 0 : i32
    %c0_i32_1 = arith.constant 0 : i32
    return %c0_i32, %c0_i32_0 : i32, i32
  }
  func.func @transform_6(%arg0: i32) -> (i32, i32) {
    %c0_i32 = arith.constant 0 : i32
    %c0_i32_0 = arith.constant 0 : i32
    %c0_i32_1 = arith.constant 0 : i32
    return %c0_i32, %c0_i32_0 : i32, i32
  }
  func.func @transform_7(%arg0: i32) -> (i32, i32) {
    %c0_i32 = arith.constant 0 : i32
    %c0_i32_0 = arith.constant 0 : i32
    %c0_i32_1 = arith.constant 0 : i32
    return %c0_i32, %c0_i32_0 : i32, i32
  }
  func.func @transform_8(%arg0: i32) -> (i32, i32) {
    %c0_i32 = arith.constant 0 : i32
    %c0_i32_0 = arith.constant 0 : i32
    %c0_i32_1 = arith.constant 0 : i32
    return %c0_i32, %c0_i32_0 : i32, i32
  }
  func.func @transform_9(%arg0: i32) -> (i32, i32) {
    %c0_i32 = arith.constant 0 : i32
    %c0_i32_0 = arith.constant 0 : i32
    %c0_i32_1 = arith.constant 0 : i32
    return %c0_i32, %c0_i32_0 : i32, i32
  }
  func.func @transform_10(%arg0: i32) -> (i32, i32) {
    %c0_i32 = arith.constant 0 : i32
    %c0_i32_0 = arith.constant 0 : i32
    %c0_i32_1 = arith.constant 0 : i32
    return %c0_i32, %c0_i32_0 : i32, i32
  }
  func.func @transform_11(%arg0: i32) -> (i32, i32) {
    %c0_i32 = arith.constant 0 : i32
    %c0_i32_0 = arith.constant 0 : i32
    %c0_i32_1 = arith.constant 0 : i32
    return %c0_i32, %c0_i32_0 : i32, i32
  }
  func.func @transform_12(%arg0: i32) -> (i32, i32, i32) {
    %c0_i32 = arith.constant 0 : i32
    %c0_i32_0 = arith.constant 0 : i32
    %c0_i32_1 = arith.constant 0 : i32
    return %arg0, %c0_i32, %c0_i32_0 : i32, i32, i32
  }
}

</mosaic_0001>

<llo_original>
// kernel: tpu_custom_call.1
$region0: #{tpu_custom_call.1}
  #allocation0 [shape = 'u32[]', space=smem, size = 0x4, offset = 0x4, fixed_abs, tag = 'smem constant byte address 0x4 - core index']
  #allocation1 [shape = 'u32[144,128]{1,0:T(1,128)}', space=vmem, size = 0x12000, scoped, tag = 'internal scratch']
  %s0 = inlined_call_operand.hbm [shape: f32[2,8,256], index: 0, kind: input, shape index: {}]
  %s1 = inlined_call_operand.vmem [shape: f32[2,16,256], index: 1, kind: input, shape index: {}]
  %s2 = inlined_call_operand.hbm [shape: f32[256,128], index: 2, kind: input, shape index: {}]
  %s3 = inlined_call_operand.vmem [shape: f32[1,128], index: 3, kind: input, shape index: {}]
  %s4 = inlined_call_operand.vmem [shape: f32[8,8], index: 4, kind: input, shape index: {}]
  %s5 = inlined_call_operand.vmem [shape: f32[8,1], index: 5, kind: input, shape index: {}]
  %s6 = inlined_call_operand.vmem [shape: f32[8,16], index: 6, kind: input, shape index: {}]
  %s7 = inlined_call_operand.vmem [shape: f32[8,1], index: 7, kind: input, shape index: {}]
  %s8 = inlined_call_operand.vmem [shape: f32[8,8], index: 8, kind: input, shape index: {}]
  %s9 = inlined_call_operand.vmem [shape: f32[8,1], index: 9, kind: input, shape index: {}]
  %s10 = inlined_call_operand.vmem [shape: f32[16,8], index: 10, kind: input, shape index: {}]
  %s11 = inlined_call_operand.vmem [shape: f32[16,1], index: 11, kind: input, shape index: {}]
  %s12 = inlined_call_operand.hbm [shape: f32[2,16,256], index: 12, kind: output, shape index: {}]
  %s13 = sld [smem:[#allocation0]]
  $region89: #{tpu_custom_call.1} parent=0
    _
  %s15 = ssub.s32 1, %s13
  %s16 = scalar_select 0, %s15, %s13
  $region1: #{tpu_custom_call.1} parent=0
    #allocation2 [shape = 'u8[16384]{0}', space=vmem, size = 0x4000, scoped, tag = 'input window, operand 0']
    #allocation3 [shape = 's32[2]{0}', space=sflag, size = 0x8, scoped, tag = 'scoped memory for tpu_custom_call.1']
    #allocation4 [shape = 's32[2]{0}', space=sflag, size = 0x8, scoped, tag = 'scoped memory for tpu_custom_call.1']
    #allocation5 [shape = 'u8[131072]{0}', space=vmem, size = 0x20000, scoped, tag = 'input window, operand 2, single buffered']
    #allocation6 [shape = 's32[1]{0}', space=sflag, size = 0x4, scoped, tag = 'scoped memory for tpu_custom_call.1']
    #allocation7 [shape = 'u8[32768]{0}', space=vmem, size = 0x8000, scoped, tag = 'output window, operand 0']
    %17 = vsyncpa [#allocation3], 0
    %s18 = scalar_lea.sflag [#allocation3], 1
    %19 = vsyncpa %s18, 0
    %20 = vsyncpa [#allocation6], 0
    %21 = vsyncpa [#allocation4], 0
    %s22 = scalar_lea.sflag [#allocation4], 1
    %23 = vsyncpa %s22, 0
    loop: start=0, step=1, limit=4
    $region2: #{tpu_custom_call.1} parent=1 // loop_pre_header
      _
    $region3: #{tpu_custom_call.1} parent=1 // loop_header
      %s25 = sphi 0, %s29
      %p26 = scmp.ge.s32.totalorder %s25, 4
      %s35 = sphi 0, %s37
      %s38 = sphi 0, %s35
      %s39 = sphi 0, %s38
      %s55 = sphi 0, %s39
      %s61 = sphi 0, %s63
      %s64 = sphi 0, %s61
      %s65 = sphi 0, %s64
      %s81 = sphi 0, %s65
      %s85 = sphi 0, %s85
      %s87 = sphi 0, %s85
      %s88 = sphi 0, %s87
      %s102 = sphi 0, %s88
      %s106 = sphi 0, %s106
      %s108 = sphi 0, %s106
      %s109 = sphi 0, %s108
      %s123 = sphi 0, %s109
      %s127 = sphi 0, %s127
      %s129 = sphi 0, %s127
      %s130 = sphi 0, %s129
      %s144 = sphi 0, %s130
      %s148 = sphi 0, %s148
      %s150 = sphi 0, %s148
      %s151 = sphi 0, %s150
      %s165 = sphi 0, %s151
      %s169 = sphi 0, %s169
      %s171 = sphi 0, %s169
      %s172 = sphi 0, %s171
      %s186 = sphi 0, %s172
      %s190 = sphi 0, %s190
      %s192 = sphi 0, %s190
      %s193 = sphi 0, %s192
      %s207 = sphi 0, %s193
      %s211 = sphi 0, %s211
      %s213 = sphi 0, %s211
      %s214 = sphi 0, %s213
      %s228 = sphi 0, %s214
      %s232 = sphi 0, %s232
      %s234 = sphi 0, %s232
      %s235 = sphi 0, %s234
      %s249 = sphi 0, %s235
      %s253 = sphi 0, %s253
      %s255 = sphi 0, %s253
      %s256 = sphi 0, %s255
      %s270 = sphi 0, %s256
      %s274 = sphi 0, %s274
      %s276 = sphi 0, %s274
      %s277 = sphi 0, %s276
      %s291 = sphi 0, %s277
      %s297 = sphi 0, %s299
      %s300 = sphi 0, %s297
      %s301 = sphi 0, %s300
      %s317 = sphi 0, %s301
    $region4: #{tpu_custom_call.1} parent=1 // loop_header_branch
      %28 = sbr.rel (%p26) target = $region8
    $region5: #{tpu_custom_call.1} parent=1 // loop_body
      %s30 = ssub.s32 %s25, 1
      %s31 = ssub.s32 %s25, 2
      %s32 = sadd.s32 %s25, 1
      %s33 = ssub.s32 %s25, %s32
      %p34 = scmp.eq.s32.totalorder %s33, 0
      %s36 = sadd.s32 %s35, 1
      %s37 = scalar_select %p34, %s35, %s36
      %p40 = pneg %p34
      %p41 = scmp.eq.s32.totalorder %s25, 1
      %p42 = por %p40, %p41
      %p43 = scmp.ne.s32.totalorder %s35, %s38
      %p44 = scmp.eq.s32.totalorder %s25, 0
      %p45 = por %p43, %p44
      %p46 = scmp.ne.s32.totalorder %s35, %s38
      %p47 = scmp.eq.s32.totalorder %s30, 1
      %p48 = por %p46, %p47
      %p49 = scmp.ne.s32.totalorder %s38, %s39
      %p50 = scmp.eq.s32.totalorder %s30, 0
      %p51 = por %p49, %p50
      %p52 = scmp.ne.s32.totalorder %s38, %s39
      %p53 = scmp.eq.s32.totalorder %s31, 1
      %p54 = por %p52, %p53
      %p56 = scmp.ne.s32.totalorder %s39, %s55
      %p57 = scmp.eq.s32.totalorder %s31, 0
      %p58 = por %p56, %p57
      %s59 = ssub.s32 %s25, %s32
      %p60 = scmp.eq.s32.totalorder %s59, 0
      %s62 = sadd.s32 %s61, 1
      %s63 = scalar_select %p60, %s61, %s62
      %p66 = pneg %p60
      %p67 = scmp.eq.s32.totalorder %s25, 1
      %p68 = por %p66, %p67
      %p69 = scmp.ne.s32.totalorder %s61, %s64
      %p70 = scmp.eq.s32.totalorder %s25, 0
      %p71 = por %p69, %p70
      %p72 = scmp.ne.s32.totalorder %s61, %s64
      %p73 = scmp.eq.s32.totalorder %s30, 1
      %p74 = por %p72, %p73
      %p75 = scmp.ne.s32.totalorder %s64, %s65
      %p76 = scmp.eq.s32.totalorder %s30, 0
      %p77 = por %p75, %p76
      %p78 = scmp.ne.s32.totalorder %s64, %s65
      %p79 = scmp.eq.s32.totalorder %s31, 1
      %p80 = por %p78, %p79
      %p82 = scmp.ne.s32.totalorder %s65, %s81
      %p83 = scmp.eq.s32.totalorder %s31, 0
      %p84 = por %p82, %p83
      %s86 = sadd.s32 %s85, 1
      %p89 = scmp.eq.s32.totalorder %s25, 1
      %p90 = scmp.ne.s32.totalorder %s85, %s87
      %p91 = scmp.eq.s32.totalorder %s25, 0
      %p92 = por %p90, %p91
      %p93 = scmp.ne.s32.totalorder %s85, %s87
      %p94 = scmp.eq.s32.totalorder %s30, 1
      %p95 = por %p93, %p94
      %p96 = scmp.ne.s32.totalorder %s87, %s88
      %p97 = scmp.eq.s32.totalorder %s30, 0
      %p98 = por %p96, %p97
      %p99 = scmp.ne.s32.totalorder %s87, %s88
      %p100 = scmp.eq.s32.totalorder %s31, 1
      %p101 = por %p99, %p100
      %p103 = scmp.ne.s32.totalorder %s88, %s102
      %p104 = scmp.eq.s32.totalorder %s31, 0
      %p105 = por %p103, %p104
      %s107 = sadd.s32 %s106, 1
      %p110 = scmp.eq.s32.totalorder %s25, 1
      %p111 = scmp.ne.s32.totalorder %s106, %s108
      %p112 = scmp.eq.s32.totalorder %s25, 0
      %p113 = por %p111, %p112
      %p114 = scmp.ne.s32.totalorder %s106, %s108
      %p115 = scmp.eq.s32.totalorder %s30, 1
      %p116 = por %p114, %p115
      %p117 = scmp.ne.s32.totalorder %s108, %s109
      %p118 = scmp.eq.s32.totalorder %s30, 0
      %p119 = por %p117, %p118
      %p120 = scmp.ne.s32.totalorder %s108, %s109
      %p121 = scmp.eq.s32.totalorder %s31, 1
      %p122 = por %p120, %p121
      %p124 = scmp.ne.s32.totalorder %s109, %s123
      %p125 = scmp.eq.s32.totalorder %s31, 0
      %p126 = por %p124, %p125
      %s128 = sadd.s32 %s127, 1
      %p131 = scmp.eq.s32.totalorder %s25, 1
      %p132 = scmp.ne.s32.totalorder %s127, %s129
      %p133 = scmp.eq.s32.totalorder %s25, 0
      %p134 = por %p132, %p133
      %p135 = scmp.ne.s32.totalorder %s127, %s129
      %p136 = scmp.eq.s32.totalorder %s30, 1
      %p137 = por %p135, %p136
      %p138 = scmp.ne.s32.totalorder %s129, %s130
      %p139 = scmp.eq.s32.totalorder %s30, 0
      %p140 = por %p138, %p139
      %p141 = scmp.ne.s32.totalorder %s129, %s130
      %p142 = scmp.eq.s32.totalorder %s31, 1
      %p143 = por %p141, %p142
      %p145 = scmp.ne.s32.totalorder %s130, %s144
      %p146 = scmp.eq.s32.totalorder %s31, 0
      %p147 = por %p145, %p146
      %s149 = sadd.s32 %s148, 1
      %p152 = scmp.eq.s32.totalorder %s25, 1
      %p153 = scmp.ne.s32.totalorder %s148, %s150
      %p154 = scmp.eq.s32.totalorder %s25, 0
      %p155 = por %p153, %p154
      %p156 = scmp.ne.s32.totalorder %s148, %s150
      %p157 = scmp.eq.s32.totalorder %s30, 1
      %p158 = por %p156, %p157
      %p159 = scmp.ne.s32.totalorder %s150, %s151
      %p160 = scmp.eq.s32.totalorder %s30, 0
      %p161 = por %p159, %p160
      %p162 = scmp.ne.s32.totalorder %s150, %s151
      %p163 = scmp.eq.s32.totalorder %s31, 1
      %p164 = por %p162, %p163
      %p166 = scmp.ne.s32.totalorder %s151, %s165
      %p167 = scmp.eq.s32.totalorder %s31, 0
      %p168 = por %p166, %p167
      %s170 = sadd.s32 %s169, 1
      %p173 = scmp.eq.s32.totalorder %s25, 1
      %p174 = scmp.ne.s32.totalorder %s169, %s171
      %p175 = scmp.eq.s32.totalorder %s25, 0
      %p176 = por %p174, %p175
      %p177 = scmp.ne.s32.totalorder %s169, %s171
      %p178 = scmp.eq.s32.totalorder %s30, 1
      %p179 = por %p177, %p178
      %p180 = scmp.ne.s32.totalorder %s171, %s172
      %p181 = scmp.eq.s32.totalorder %s30, 0
      %p182 = por %p180, %p181
      %p183 = scmp.ne.s32.totalorder %s171, %s172
      %p184 = scmp.eq.s32.totalorder %s31, 1
      %p185 = por %p183, %p184
      %p187 = scmp.ne.s32.totalorder %s172, %s186
      %p188 = scmp.eq.s32.totalorder %s31, 0
      %p189 = por %p187, %p188
      %s191 = sadd.s32 %s190, 1
      %p194 = scmp.eq.s32.totalorder %s25, 1
      %p195 = scmp.ne.s32.totalorder %s190, %s192
      %p196 = scmp.eq.s32.totalorder %s25, 0
      %p197 = por %p195, %p196
      %p198 = scmp.ne.s32.totalorder %s190, %s192
      %p199 = scmp.eq.s32.totalorder %s30, 1
      %p200 = por %p198, %p199
      %p201 = scmp.ne.s32.totalorder %s192, %s193
      %p202 = scmp.eq.s32.totalorder %s30, 0
      %p203 = por %p201, %p202
      %p204 = scmp.ne.s32.totalorder %s192, %s193
      %p205 = scmp.eq.s32.totalorder %s31, 1
      %p206 = por %p204, %p205
      %p208 = scmp.ne.s32.totalorder %s193, %s207
      %p209 = scmp.eq.s32.totalorder %s31, 0
      %p210 = por %p208, %p209
      %s212 = sadd.s32 %s211, 1
      %p215 = scmp.eq.s32.totalorder %s25, 1
      %p216 = scmp.ne.s32.totalorder %s211, %s213
      %p217 = scmp.eq.s32.totalorder %s25, 0
      %p218 = por %p216, %p217
      %p219 = scmp.ne.s32.totalorder %s211, %s213
      %p220 = scmp.eq.s32.totalorder %s30, 1
      %p221 = por %p219, %p220
      %p222 = scmp.ne.s32.totalorder %s213, %s214
      %p223 = scmp.eq.s32.totalorder %s30, 0
      %p224 = por %p222, %p223
      %p225 = scmp.ne.s32.totalorder %s213, %s214
      %p226 = scmp.eq.s32.totalorder %s31, 1
      %p227 = por %p225, %p226
      %p229 = scmp.ne.s32.totalorder %s214, %s228
      %p230 = scmp.eq.s32.totalorder %s31, 0
      %p231 = por %p229, %p230
      %s233 = sadd.s32 %s232, 1
      %p236 = scmp.eq.s32.totalorder %s25, 1
      %p237 = scmp.ne.s32.totalorder %s232, %s234
      %p238 = scmp.eq.s32.totalorder %s25, 0
      %p239 = por %p237, %p238
      %p240 = scmp.ne.s32.totalorder %s232, %s234
      %p241 = scmp.eq.s32.totalorder %s30, 1
      %p242 = por %p240, %p241
      %p243 = scmp.ne.s32.totalorder %s234, %s235
      %p244 = scmp.eq.s32.totalorder %s30, 0
      %p245 = por %p243, %p244
      %p246 = scmp.ne.s32.totalorder %s234, %s235
      %p247 = scmp.eq.s32.totalorder %s31, 1
      %p248 = por %p246, %p247
      %p250 = scmp.ne.s32.totalorder %s235, %s249
      %p251 = scmp.eq.s32.totalorder %s31, 0
      %p252 = por %p250, %p251
      %s254 = sadd.s32 %s253, 1
      %p257 = scmp.eq.s32.totalorder %s25, 1
      %p258 = scmp.ne.s32.totalorder %s253, %s255
      %p259 = scmp.eq.s32.totalorder %s25, 0
      %p260 = por %p258, %p259
      %p261 = scmp.ne.s32.totalorder %s253, %s255
      %p262 = scmp.eq.s32.totalorder %s30, 1
      %p263 = por %p261, %p262
      %p264 = scmp.ne.s32.totalorder %s255, %s256
      %p265 = scmp.eq.s32.totalorder %s30, 0
      %p266 = por %p264, %p265
      %p267 = scmp.ne.s32.totalorder %s255, %s256
      %p268 = scmp.eq.s32.totalorder %s31, 1
      %p269 = por %p267, %p268
      %p271 = scmp.ne.s32.totalorder %s256, %s270
      %p272 = scmp.eq.s32.totalorder %s31, 0
      %p273 = por %p271, %p272
      %s275 = sadd.s32 %s274, 1
      %p278 = scmp.eq.s32.totalorder %s25, 1
      %p279 = scmp.ne.s32.totalorder %s274, %s276
      %p280 = scmp.eq.s32.totalorder %s25, 0
      %p281 = por %p279, %p280
      %p282 = scmp.ne.s32.totalorder %s274, %s276
      %p283 = scmp.eq.s32.totalorder %s30, 1
      %p284 = por %p282, %p283
      %p285 = scmp.ne.s32.totalorder %s276, %s277
      %p286 = scmp.eq.s32.totalorder %s30, 0
      %p287 = por %p285, %p286
      %p288 = scmp.ne.s32.totalorder %s276, %s277
      %p289 = scmp.eq.s32.totalorder %s31, 1
      %p290 = por %p288, %p289
      %p292 = scmp.ne.s32.totalorder %s277, %s291
      %p293 = scmp.eq.s32.totalorder %s31, 0
      %p294 = por %p292, %p293
      %s295 = ssub.s32 %s25, %s32
      %p296 = scmp.eq.s32.totalorder %s295, 0
      %s298 = sadd.s32 %s297, 1
      %s299 = scalar_select %p296, %s297, %s298
      %p302 = pneg %p296
      %p303 = scmp.eq.s32.totalorder %s25, 1
      %p304 = por %p302, %p303
      %p305 = scmp.ne.s32.totalorder %s297, %s300
      %p306 = scmp.eq.s32.totalorder %s25, 0
      %p307 = por %p305, %p306
      %p308 = scmp.ne.s32.totalorder %s297, %s300
      %p309 = scmp.eq.s32.totalorder %s30, 1
      %p310 = por %p308, %p309
      %p311 = scmp.ne.s32.totalorder %s300, %s301
      %p312 = scmp.eq.s32.totalorder %s30, 0
      %p313 = por %p311, %p312
      %p314 = scmp.ne.s32.totalorder %s300, %s301
      %p315 = scmp.eq.s32.totalorder %s31, 1
      %p316 = por %p314, %p315
      %p318 = scmp.ne.s32.totalorder %s301, %s317
      %p319 = scmp.eq.s32.totalorder %s31, 0
      %p320 = por %p318, %p319
      %p321 = scmp.le.s32.totalorder 1, %s25
      %p322 = scmp.lt.s32.totalorder %s25, 3
      %p323 = pnand %p321, %p322
      %p324 = pneg %p323
      // Predicated region
      $region9: #{tpu_custom_call.1} parent=5 // pred_check
        _
      $region10: #{tpu_custom_call.1} parent=5 // pred_check_branch
        %326 = sbr.rel (%p323) target = $region12
      $region11: #{tpu_custom_call.1} parent=5 // pred_region
        %s327 = ssub.s32 %s25, 1
        // Predicated region
        $region13: #{tpu_custom_call.1} parent=11 // pred_check
          %p328 = pneg %p98
        $region14: #{tpu_custom_call.1} parent=11 // pred_check_branch
          %330 = sbr.rel (%p328) target = $region16
        $region15: #{tpu_custom_call.1} parent=11 // pred_region
          %s332 = ssub.s32 4096, 4096
          %333 = vsyncadd [#allocation6], %s332
          %s334 = sshll.u32 [#allocation5], 4
          %s335 = int_to_ptr.vmem [resolvable:$true] %s334
          %340 = dma.hbm_to_vmem [thread:$0]  %s2, 4096, %s335, [#allocation6], 128, 128, 8
        $region16: #{tpu_custom_call.1} parent=11 // pred_fallthru
          _
        // Predicated region
        $region17: #{tpu_custom_call.1} parent=11 // pred_check
          %p341 = pneg %p119
        $region18: #{tpu_custom_call.1} parent=11 // pred_check_branch
          %343 = sbr.rel (%p341) target = $region20
        $region19: #{tpu_custom_call.1} parent=11 // pred_region
          _
        $region20: #{tpu_custom_call.1} parent=11 // pred_fallthru
          _
        // Predicated region
        $region21: #{tpu_custom_call.1} parent=11 // pred_check
          %p344 = pneg %p140
        $region22: #{tpu_custom_call.1} parent=11 // pred_check_branch
          %346 = sbr.rel (%p344) target = $region24
        $region23: #{tpu_custom_call.1} parent=11 // pred_region
          _
        $region24: #{tpu_custom_call.1} parent=11 // pred_fallthru
          _
        // Predicated region
        $region25: #{tpu_custom_call.1} parent=11 // pred_check
          %p347 = pneg %p161
        $region26: #{tpu_custom_call.1} parent=11 // pred_check_branch
          %349 = sbr.rel (%p347) target = $region28
        $region27: #{tpu_custom_call.1} parent=11 // pred_region
          _
        $region28: #{tpu_custom_call.1} parent=11 // pred_fallthru
          _
        // Predicated region
        $region29: #{tpu_custom_call.1} parent=11 // pred_check
          %p350 = pneg %p182
        $region30: #{tpu_custom_call.1} parent=11 // pred_check_branch
          %352 = sbr.rel (%p350) target = $region32
        $region31: #{tpu_custom_call.1} parent=11 // pred_region
          _
        $region32: #{tpu_custom_call.1} parent=11 // pred_fallthru
          _
        // Predicated region
        $region33: #{tpu_custom_call.1} parent=11 // pred_check
          %p353 = pneg %p203
        $region34: #{tpu_custom_call.1} parent=11 // pred_check_branch
          %355 = sbr.rel (%p353) target = $region36
        $region35: #{tpu_custom_call.1} parent=11 // pred_region
          _
        $region36: #{tpu_custom_call.1} parent=11 // pred_fallthru
          _
        // Predicated region
        $region37: #{tpu_custom_call.1} parent=11 // pred_check
          %p356 = pneg %p224
        $region38: #{tpu_custom_call.1} parent=11 // pred_check_branch
          %358 = sbr.rel (%p356) target = $region40
        $region39: #{tpu_custom_call.1} parent=11 // pred_region
          _
        $region40: #{tpu_custom_call.1} parent=11 // pred_fallthru
          _
        // Predicated region
        $region41: #{tpu_custom_call.1} parent=11 // pred_check
          %p359 = pneg %p245
        $region42: #{tpu_custom_call.1} parent=11 // pred_check_branch
          %361 = sbr.rel (%p359) target = $region44
        $region43: #{tpu_custom_call.1} parent=11 // pred_region
          _
        $region44: #{tpu_custom_call.1} parent=11 // pred_fallthru
          _
        // Predicated region
        $region45: #{tpu_custom_call.1} parent=11 // pred_check
          %p362 = pneg %p266
        $region46: #{tpu_custom_call.1} parent=11 // pred_check_branch
          %364 = sbr.rel (%p362) target = $region48
        $region47: #{tpu_custom_call.1} parent=11 // pred_region
          _
        $region48: #{tpu_custom_call.1} parent=11 // pred_fallthru
          _
        // Predicated region
        $region49: #{tpu_custom_call.1} parent=11 // pred_check
          %p365 = pneg %p287
        $region50: #{tpu_custom_call.1} parent=11 // pred_check_branch
          %367 = sbr.rel (%p365) target = $region52
        $region51: #{tpu_custom_call.1} parent=11 // pred_region
          _
        $region52: #{tpu_custom_call.1} parent=11 // pred_fallthru
          _
      $region12: #{tpu_custom_call.1} parent=5 // pred_fallthru
        _
      %p368 = scmp.lt.s32.totalorder %s25, 2
      // Predicated region
      $region53: #{tpu_custom_call.1} parent=5 // pred_check
        %p369 = pneg %p368
      $region54: #{tpu_custom_call.1} parent=5 // pred_check_branch
        %371 = sbr.rel (%p369) target = $region56
      $region55: #{tpu_custom_call.1} parent=5 // pred_region
        // Predicated region
        $region57: #{tpu_custom_call.1} parent=55 // pred_check
          %p372 = pneg %p45
        $region58: #{tpu_custom_call.1} parent=55 // pred_check_branch
          %374 = sbr.rel (%p372) target = $region60
        $region59: #{tpu_custom_call.1} parent=55 // pred_region
          %s375 = sand.u32 %s35, 1
          %s376 = scalar_lea.sflag [#allocation3], %s375
          %s377 = sand.u32 %s35, 1
          %s378 = smul.addr %s377, 16
          %s379 = scalar_lea.vmem [#allocation2], %s378
          %s381 = ssub.s32 256, 256
          %382 = vsyncadd %s376, %s381
          %s383 = smul.addr %s25, 2
          %s384 = smul.addr %s383, 128
          %s385 = scalar_lea.hbm %s0, %s384
          %s387 = sshll.u32 %s379, 4
          %s388 = int_to_ptr.vmem [resolvable:$true] %s387
          %390 = dma.hbm_to_vmem [thread:$0]  %s385, 256, %s388, %s376
        $region60: #{tpu_custom_call.1} parent=55 // pred_fallthru
          _
        // Predicated region
        $region61: #{tpu_custom_call.1} parent=55 // pred_check
          %p391 = pneg %p71
        $region62: #{tpu_custom_call.1} parent=55 // pred_check_branch
          %393 = sbr.rel (%p391) target = $region64
        $region63: #{tpu_custom_call.1} parent=55 // pred_region
          %p394 = scmp.lt.s32.totalorder %s25, 1
          %s395 = scalar_select %p394, %s25, 1
          %s396 = smul.addr %s395, 4
          %s397 = smul.addr %s396, 8
          %s398 = scalar_lea.vmem %s1, %s397
        $region64: #{tpu_custom_call.1} parent=55 // pred_fallthru
          _
      $region56: #{tpu_custom_call.1} parent=5 // pred_fallthru
        _
      %p399 = scmp.le.s32.totalorder 1, %s25
      %p400 = scmp.lt.s32.totalorder %s25, 3
      %p401 = pnand %p399, %p400
      %p402 = pneg %p401
      // Predicated region
      $region65: #{tpu_custom_call.1} parent=5 // pred_check
        _
      $region66: #{tpu_custom_call.1} parent=5 // pred_check_branch
        %404 = sbr.rel (%p401) target = $region68
      $region67: #{tpu_custom_call.1} parent=5 // pred_region
        %s405 = ssub.s32 %s25, 1
        %s406 = sand.u32 %s38, 1
        %s407 = scalar_lea.sflag [#allocation3], %s406
        %s408 = sand.u32 %s38, 1
        %s409 = smul.addr %s408, 16
        %s410 = scalar_lea.vmem [#allocation2], %s409
        // Predicated region
        $region69: #{tpu_custom_call.1} parent=67 // pred_check
          %p411 = pneg %p51
        $region70: #{tpu_custom_call.1} parent=67 // pred_check_branch
          %413 = sbr.rel (%p411) target = $region72
        $region71: #{tpu_custom_call.1} parent=67 // pred_region
          %414 = dma.done %s407, 256
        $region72: #{tpu_custom_call.1} parent=67 // pred_fallthru
          _
        // Predicated region
        $region73: #{tpu_custom_call.1} parent=67 // pred_check
          %p415 = pneg %p98
        $region74: #{tpu_custom_call.1} parent=67 // pred_check_branch
          %417 = sbr.rel (%p415) target = $region76
        $region75: #{tpu_custom_call.1} parent=67 // pred_region
          %418 = dma.done [#allocation6], 4096
        $region76: #{tpu_custom_call.1} parent=67 // pred_fallthru
          _
        %s419 = sand.u32 %s38, 1
        %s420 = scalar_lea.sflag [#allocation3], %s419
        %s421 = sand.u32 %s38, 1
        %s422 = smul.addr %s421, 16
        %s423 = scalar_lea.vmem [#allocation2], %s422
        %p424 = pneg %p51
        %p425 = pneg %p48
        %p426 = scmp.lt.s32.totalorder %s30, 1
        %s427 = scalar_select %p426, %s30, 1
        %s428 = smul.addr %s427, 4
        %s429 = smul.addr %s428, 8
        %s430 = scalar_lea.vmem %s1, %s429
        %p431 = pneg %p77
        %p432 = pneg %p74
        %p433 = pneg %p98
        %p434 = pneg %p95
        %p435 = pneg %p119
        %p436 = pneg %p116
        %p437 = pneg %p140
        %p438 = pneg %p137
        %p439 = pneg %p161
        %p440 = pneg %p158
        %p441 = pneg %p182
        %p442 = pneg %p179
        %p443 = pneg %p203
        %p444 = pneg %p200
        %p445 = pneg %p224
        %p446 = pneg %p221
        %p447 = pneg %p245
        %p448 = pneg %p242
        %p449 = pneg %p266
        %p450 = pneg %p263
        %p451 = pneg %p287
        %p452 = pneg %p284
        %p453 = pneg %p313
        %p454 = pneg %p310
        %s455 = sand.u32 %s300, 1
        %s456 = scalar_lea.sflag [#allocation4], %s455
        %s457 = sand.u32 %s300, 1
        %s458 = smul.addr %s457, 32
        %s459 = scalar_lea.vmem [#allocation7], %s458
        %p460 = scmp.lt.s32.totalorder %s30, 1
        %s461 = scalar_select %p460, %s30, 1
        %s462 = smul.addr %s461, 4
        %s463 = smul.addr %s462, 8
        %s464 = scalar_lea.vmem %s1, %s463
        %v465 = vld [vmem:[%s410] sm:$0xff]
        %v466 = vld [vmem:[%s410 + $0x8] sm:$0xff]
        %v467 = vld [vmem:[%s464] sm:$0xff]
        %v468 = vld [vmem:[%s464 + $0x8] sm:$0xff]
        %v469 = vld [vmem:[%s464 + $0x10] sm:$0xff]
        %v470 = vld [vmem:[%s464 + $0x18] sm:$0xff]
        %v471 = vld [vmem:[#allocation5] sm:$0xff]
        %v472 = vld [vmem:[#allocation5 + $0x8] sm:$0xff]
        %v473 = vld [vmem:[#allocation5 + $0x10] sm:$0xff]
        %v474 = vld [vmem:[#allocation5 + $0x18] sm:$0xff]
        %v475 = vld [vmem:[#allocation5 + $0x20] sm:$0xff]
        %v476 = vld [vmem:[#allocation5 + $0x28] sm:$0xff]
        %v477 = vld [vmem:[#allocation5 + $0x30] sm:$0xff]
        %v478 = vld [vmem:[#allocation5 + $0x38] sm:$0xff]
        %v479 = vld [vmem:[#allocation5 + $0x40] sm:$0xff]
        %v480 = vld [vmem:[#allocation5 + $0x48] sm:$0xff]
        %v481 = vld [vmem:[#allocation5 + $0x50] sm:$0xff]
        %v482 = vld [vmem:[#allocation5 + $0x58] sm:$0xff]
        %v483 = vld [vmem:[#allocation5 + $0x60] sm:$0xff]
        %v484 = vld [vmem:[#allocation5 + $0x68] sm:$0xff]
        %v485 = vld [vmem:[#allocation5 + $0x70] sm:$0xff]
        %v486 = vld [vmem:[#allocation5 + $0x78] sm:$0xff]
        %v487 = vld [vmem:[#allocation5 + $0x80] sm:$0xff]
        %v488 = vld [vmem:[#allocation5 + $0x88] sm:$0xff]
        %v489 = vld [vmem:[#allocation5 + $0x90] sm:$0xff]
        %v490 = vld [vmem:[#allocation5 + $0x98] sm:$0xff]
        %v491 = vld [vmem:[#allocation5 + $0xa0] sm:$0xff]
        %v492 = vld [vmem:[#allocation5 + $0xa8] sm:$0xff]
        %v493 = vld [vmem:[#allocation5 + $0xb0] sm:$0xff]
        %v494 = vld [vmem:[#allocation5 + $0xb8] sm:$0xff]
        %v495 = vld [vmem:[#allocation5 + $0xc0] sm:$0xff]
        %v496 = vld [vmem:[#allocation5 + $0xc8] sm:$0xff]
        %v497 = vld [vmem:[#allocation5 + $0xd0] sm:$0xff]
        %v498 = vld [vmem:[#allocation5 + $0xd8] sm:$0xff]
        %v499 = vld [vmem:[#allocation5 + $0xe0] sm:$0xff]
        %v500 = vld [vmem:[#allocation5 + $0xe8] sm:$0xff]
        %v501 = vld [vmem:[#allocation5 + $0xf0] sm:$0xff]
        %v502 = vld [vmem:[#allocation5 + $0xf8] sm:$0xff]
        %503 = vmatprep.subr.mxu0 0.0
        %504 = vmatpush1.msra.mxu0 %v471
        %505 = vmatprep.subr.mxu0 0.0
        %506 = vmatpush1.msra.mxu0 %v472
        %507 = vmatprep.subr.mxu0 0.0
        %508 = vmatpush1.msra.mxu0 %v473
        %509 = vmatprep.subr.mxu0 0.0
        %510 = vmatpush1.msra.mxu0 %v474
        %511 = vmatprep.subr.mxu0 0.0
        %512 = vmatpush1.msra.mxu0 %v475
        %513 = vmatprep.subr.mxu0 0.0
        %514 = vmatpush1.msra.mxu0 %v476
        %515 = vmatprep.subr.mxu0 0.0
        %516 = vmatpush1.msra.mxu0 %v477
        %517 = vmatprep.subr.mxu0 0.0
        %518 = vmatpush1.msra.mxu0 %v478
        %519 = vmatprep.subr.mxu0 0.0
        %520 = vmatpush1.msra.mxu0 %v479
        %521 = vmatprep.subr.mxu0 0.0
        %522 = vmatpush1.msra.mxu0 %v480
        %523 = vmatprep.subr.mxu0 0.0
        %524 = vmatpush1.msra.mxu0 %v481
        %525 = vmatprep.subr.mxu0 0.0
        %526 = vmatpush1.msra.mxu0 %v482
        %527 = vmatprep.subr.mxu0 0.0
        %528 = vmatpush1.msra.mxu0 %v483
        %529 = vmatprep.subr.mxu0 0.0
        %530 = vmatpush1.msra.mxu0 %v484
        %531 = vmatprep.subr.mxu0 0.0
        %532 = vmatpush1.msra.mxu0 %v485
        %533 = vmatprep.subr.mxu0 0.0
        %534 = vmatpush1.msra.mxu0 %v486
        %535 = vmatprep.subr.mxu0 0.0
        %536 = vmatpush1.msra.mxu0 %v487
        %537 = vmatprep.subr.mxu0 0.0
        %538 = vmatpush1.msra.mxu0 %v488
        %539 = vmatprep.subr.mxu0 0.0
        %540 = vmatpush1.msra.mxu0 %v489
        %541 = vmatprep.subr.mxu0 0.0
        %542 = vmatpush1.msra.mxu0 %v490
        %543 = vmatprep.subr.mxu0 0.0
        %544 = vmatpush1.msra.mxu0 %v491
        %545 = vmatprep.subr.mxu0 0.0
        %546 = vmatpush1.msra.mxu0 %v492
        %547 = vmatprep.subr.mxu0 0.0
        %548 = vmatpush1.msra.mxu0 %v493
        %549 = vmatprep.subr.mxu0 0.0
        %550 = vmatpush1.msra.mxu0 %v494
        %551 = vmatprep.subr.mxu0 0.0
        %552 = vmatpush1.msra.mxu0 %v495
        %553 = vmatprep.subr.mxu0 0.0
        %554 = vmatpush1.msra.mxu0 %v496
        %555 = vmatprep.subr.mxu0 0.0
        %556 = vmatpush1.msra.mxu0 %v497
        %557 = vmatprep.subr.mxu0 0.0
        %558 = vmatpush1.msra.mxu0 %v498
        %559 = vmatprep.subr.mxu0 0.0
        %560 = vmatpush1.msra.mxu0 %v499
        %561 = vmatprep.subr.mxu0 0.0
        %562 = vmatpush1.msra.mxu0 %v500
        %563 = vmatprep.subr.mxu0 0.0
        %564 = vmatpush1.msra.mxu0 %v501
        %565 = vmatprep.subr.mxu0 0.0
        %566 = vmatpush1.msra.mxu0 %v502
        %567 = vmatprep.mubr.f32.mxu0 %v466
        %568 = vmatmul.mubr.f32.gmra.mrb[0].mxu0 %v465
        %v569 = vpop.f32.mrb[0].mxu0
        %v570 = vadd.f32 0.0, %v569
        %v571 = vpop.f32.mrb[0].mxu0
        %572 = vdwg.mxu0
        %v573 = vld [vmem:[%s8] sm:$0xff]
        %v574 = vld [vmem:[%s9] sm:$0xff]
        %576 = vset.pattern.permute.xlu0 0
        %577 = vperm.xlu0 %576, %v574
        %v578 = vpop.permute.xlu0 %577
        %vm580 = vcmask 64512
        %v582 = vsel %vm580, %v573, 0
        %584 = vmatprep.subr.mxu0 0.0
        %585 = vmatpush1.msra.mxu0 %v570
        %586 = vmatprep.subr.mxu0 0.0
        %587 = vmatpush1.msra.mxu0 0.0
        %588 = vmatprep.subr.mxu0 0.0
        %589 = vmatpush1.msra.mxu0 0.0
        %590 = vmatprep.subr.mxu0 0.0
        %591 = vmatpush1.msra.mxu0 0.0
        %592 = vmatprep.subr.mxu0 0.0
        %593 = vmatpush1.msra.mxu0 0.0
        %594 = vmatprep.subr.mxu0 0.0
        %595 = vmatpush1.msra.mxu0 0.0
        %596 = vmatprep.subr.mxu0 0.0
        %597 = vmatpush1.msra.mxu0 0.0
        %598 = vmatprep.subr.mxu0 0.0
        %599 = vmatpush1.msra.mxu0 0.0
        %600 = vmatprep.subr.mxu0 0.0
        %601 = vmatpush1.msra.mxu0 0.0
        %602 = vmatprep.subr.mxu0 0.0
        %603 = vmatpush1.msra.mxu0 0.0
        %604 = vmatprep.subr.mxu0 0.0
        %605 = vmatpush1.msra.mxu0 0.0
        %606 = vmatprep.subr.mxu0 0.0
        %607 = vmatpush1.msra.mxu0 0.0
        %608 = vmatprep.subr.mxu0 0.0
        %609 = vmatpush1.msra.mxu0 0.0
        %610 = vmatprep.subr.mxu0 0.0
        %611 = vmatpush1.msra.mxu0 0.0
        %612 = vmatprep.subr.mxu0 0.0
        %613 = vmatpush1.msra.mxu0 0.0
        %614 = vmatprep.subr.mxu0 0.0
        %615 = vmatpush1.msra.mxu0 0.0
        %616 = vmatprep.subr.mxu0 0.0
        %617 = vmatpush1.msra.mxu0 0.0
        %618 = vmatprep.subr.mxu0 0.0
        %619 = vmatpush1.msra.mxu0 0.0
        %620 = vmatprep.subr.mxu0 0.0
        %621 = vmatpush1.msra.mxu0 0.0
        %622 = vmatprep.subr.mxu0 0.0
        %623 = vmatpush1.msra.mxu0 0.0
        %624 = vmatprep.subr.mxu0 0.0
        %625 = vmatpush1.msra.mxu0 0.0
        %626 = vmatprep.subr.mxu0 0.0
        %627 = vmatpush1.msra.mxu0 0.0
        %628 = vmatprep.subr.mxu0 0.0
        %629 = vmatpush1.msra.mxu0 0.0
        %630 = vmatprep.subr.mxu0 0.0
        %631 = vmatpush1.msra.mxu0 0.0
        %632 = vmatprep.subr.mxu0 0.0
        %633 = vmatpush1.msra.mxu0 0.0
        %634 = vmatprep.subr.mxu0 0.0
        %635 = vmatpush1.msra.mxu0 0.0
        %636 = vmatprep.subr.mxu0 0.0
        %637 = vmatpush1.msra.mxu0 0.0
        %638 = vmatprep.subr.mxu0 0.0
        %639 = vmatpush1.msra.mxu0 0.0
        %640 = vmatprep.subr.mxu0 0.0
        %641 = vmatpush1.msra.mxu0 0.0
        %642 = vmatprep.subr.mxu0 0.0
        %643 = vmatpush1.msra.mxu0 0.0
        %644 = vmatprep.subr.mxu0 0.0
        %645 = vmatpush1.msra.mxu0 0.0
        %646 = vmatprep.subr.mxu0 0.0
        %647 = vmatpush1.msra.mxu0 0.0
        %648 = vmatprep.mubr.f32.mxu0 0.0
        %649 = vmatmul.mubr.f32.gmra.mrb[0].mxu0 %v582
        %v650 = vpop.f32.mrb[0].mxu0
        %v651 = vadd.f32 %v578, %v650
        %v652 = vpop.f32.mrb[0].mxu0
        %653 = vdwg.mxu0
        %v654 = vld [vmem:[%s10] sm:$0xff]
        %v655 = vld [vmem:[%s10 + $0x8] sm:$0xff]
        %v657 = vsel %vm580, %v654, 0
        %v660 = vsel %vm580, %v655, 0
        %662 = vmatprep.subr.mxu0 0.0
        %663 = vmatpush1.msra.mxu0 %v651
        %664 = vmatprep.subr.mxu0 0.0
        %665 = vmatpush1.msra.mxu0 0.0
        %666 = vmatprep.subr.mxu0 0.0
        %667 = vmatpush1.msra.mxu0 0.0
        %668 = vmatprep.subr.mxu0 0.0
        %669 = vmatpush1.msra.mxu0 0.0
        %670 = vmatprep.subr.mxu0 0.0
        %671 = vmatpush1.msra.mxu0 0.0
        %672 = vmatprep.subr.mxu0 0.0
        %673 = vmatpush1.msra.mxu0 0.0
        %674 = vmatprep.subr.mxu0 0.0
        %675 = vmatpush1.msra.mxu0 0.0
        %676 = vmatprep.subr.mxu0 0.0
        %677 = vmatpush1.msra.mxu0 0.0
        %678 = vmatprep.subr.mxu0 0.0
        %679 = vmatpush1.msra.mxu0 0.0
        %680 = vmatprep.subr.mxu0 0.0
        %681 = vmatpush1.msra.mxu0 0.0
        %682 = vmatprep.subr.mxu0 0.0
        %683 = vmatpush1.msra.mxu0 0.0
        %684 = vmatprep.subr.mxu0 0.0
        %685 = vmatpush1.msra.mxu0 0.0
        %686 = vmatprep.subr.mxu0 0.0
        %687 = vmatpush1.msra.mxu0 0.0
        %688 = vmatprep.subr.mxu0 0.0
        %689 = vmatpush1.msra.mxu0 0.0
        %690 = vmatprep.subr.mxu0 0.0
        %691 = vmatpush1.msra.mxu0 0.0
        %692 = vmatprep.subr.mxu0 0.0
        %693 = vmatpush1.msra.mxu0 0.0
        %694 = vmatprep.subr.mxu0 0.0
        %695 = vmatpush1.msra.mxu0 0.0
        %696 = vmatprep.subr.mxu0 0.0
        %697 = vmatpush1.msra.mxu0 0.0
        %698 = vmatprep.subr.mxu0 0.0
        %699 = vmatpush1.msra.mxu0 0.0
        %700 = vmatprep.subr.mxu0 0.0
        %701 = vmatpush1.msra.mxu0 0.0
        %702 = vmatprep.subr.mxu0 0.0
        %703 = vmatpush1.msra.mxu0 0.0
        %704 = vmatprep.subr.mxu0 0.0
        %705 = vmatpush1.msra.mxu0 0.0
        %706 = vmatprep.subr.mxu0 0.0
        %707 = vmatpush1.msra.mxu0 0.0
        %708 = vmatprep.subr.mxu0 0.0
        %709 = vmatpush1.msra.mxu0 0.0
        %710 = vmatprep.subr.mxu0 0.0
        %711 = vmatpush1.msra.mxu0 0.0
        %712 = vmatprep.subr.mxu0 0.0
        %713 = vmatpush1.msra.mxu0 0.0
        %714 = vmatprep.subr.mxu0 0.0
        %715 = vmatpush1.msra.mxu0 0.0
        %716 = vmatprep.subr.mxu0 0.0
        %717 = vmatpush1.msra.mxu0 0.0
        %718 = vmatprep.subr.mxu0 0.0
        %719 = vmatpush1.msra.mxu0 0.0
        %720 = vmatprep.subr.mxu0 0.0
        %721 = vmatpush1.msra.mxu0 0.0
        %722 = vmatprep.subr.mxu0 0.0
        %723 = vmatpush1.msra.mxu0 0.0
        %724 = vmatprep.subr.mxu0 0.0
        %725 = vmatpush1.msra.mxu0 0.0
        %726 = vmatprep.mubr.f32.mxu0 0.0
        %727 = vmatmul.mubr.f32.gmra.mrb[0].mxu0 %v657
        %v728 = vpop.f32.mrb[0].mxu0
        %v729 = vadd.f32 0.0, %v728
        %v730 = vpop.f32.mrb[0].mxu0
        %731 = vmatprep.mubr.f32.mxu0 0.0
        %732 = vmatmul.mubr.f32.gmra.mrb[0].mxu0 %v660
        %v733 = vpop.f32.mrb[0].mxu0
        %v734 = vadd.f32 0.0, %v733
        %v735 = vpop.f32.mrb[0].mxu0
        %736 = vdwg.mxu0
        %v737 = vld [vmem:[%s4] sm:$0xff]
        %v738 = vld [vmem:[%s5] sm:$0xff]
        %740 = vset.pattern.permute.xlu0 0
        %741 = vperm.xlu0 %740, %v738
        %v742 = vpop.permute.xlu0 %741
        %v745 = vsel %vm580, %v737, 0
        %747 = vmatprep.subr.mxu0 %v466
        %748 = vmatpush1.msra.mxu0 %v465
        %749 = vmatprep.subr.mxu0 0.0
        %750 = vmatpush1.msra.mxu0 0.0
        %751 = vmatprep.subr.mxu0 0.0
        %752 = vmatpush1.msra.mxu0 0.0
        %753 = vmatprep.subr.mxu0 0.0
        %754 = vmatpush1.msra.mxu0 0.0
        %755 = vmatprep.subr.mxu0 0.0
        %756 = vmatpush1.msra.mxu0 0.0
        %757 = vmatprep.subr.mxu0 0.0
        %758 = vmatpush1.msra.mxu0 0.0
        %759 = vmatprep.subr.mxu0 0.0
        %760 = vmatpush1.msra.mxu0 0.0
        %761 = vmatprep.subr.mxu0 0.0
        %762 = vmatpush1.msra.mxu0 0.0
        %763 = vmatprep.subr.mxu0 0.0
        %764 = vmatpush1.msra.mxu0 0.0
        %765 = vmatprep.subr.mxu0 0.0
        %766 = vmatpush1.msra.mxu0 0.0
        %767 = vmatprep.subr.mxu0 0.0
        %768 = vmatpush1.msra.mxu0 0.0
        %769 = vmatprep.subr.mxu0 0.0
        %770 = vmatpush1.msra.mxu0 0.0
        %771 = vmatprep.subr.mxu0 0.0
        %772 = vmatpush1.msra.mxu0 0.0
        %773 = vmatprep.subr.mxu0 0.0
        %774 = vmatpush1.msra.mxu0 0.0
        %775 = vmatprep.subr.mxu0 0.0
        %776 = vmatpush1.msra.mxu0 0.0
        %777 = vmatprep.subr.mxu0 0.0
        %778 = vmatpush1.msra.mxu0 0.0
        %779 = vmatprep.subr.mxu0 0.0
        %780 = vmatpush1.msra.mxu0 0.0
        %781 = vmatprep.subr.mxu0 0.0
        %782 = vmatpush1.msra.mxu0 0.0
        %783 = vmatprep.subr.mxu0 0.0
        %784 = vmatpush1.msra.mxu0 0.0
        %785 = vmatprep.subr.mxu0 0.0
        %786 = vmatpush1.msra.mxu0 0.0
        %787 = vmatprep.subr.mxu0 0.0
        %788 = vmatpush1.msra.mxu0 0.0
        %789 = vmatprep.subr.mxu0 0.0
        %790 = vmatpush1.msra.mxu0 0.0
        %791 = vmatprep.subr.mxu0 0.0
        %792 = vmatpush1.msra.mxu0 0.0
        %793 = vmatprep.subr.mxu0 0.0
        %794 = vmatpush1.msra.mxu0 0.0
        %795 = vmatprep.subr.mxu0 0.0
        %796 = vmatpush1.msra.mxu0 0.0
        %797 = vmatprep.subr.mxu0 0.0
        %798 = vmatpush1.msra.mxu0 0.0
        %799 = vmatprep.subr.mxu0 0.0
        %800 = vmatpush1.msra.mxu0 0.0
        %801 = vmatprep.subr.mxu0 0.0
        %802 = vmatpush1.msra.mxu0 0.0
        %803 = vmatprep.subr.mxu0 0.0
        %804 = vmatpush1.msra.mxu0 0.0
        %805 = vmatprep.subr.mxu0 0.0
        %806 = vmatpush1.msra.mxu0 0.0
        %807 = vmatprep.subr.mxu0 0.0
        %808 = vmatpush1.msra.mxu0 0.0
        %809 = vmatprep.subr.mxu0 0.0
        %810 = vmatpush1.msra.mxu0 0.0
        %811 = vmatprep.mubr.f32.mxu0 0.0
        %812 = vmatmul.mubr.f32.gmra.mrb[0].mxu0 %v745
        %v813 = vpop.f32.mrb[0].mxu0
        %v814 = vadd.f32 %v742, %v813
        %v815 = vpop.f32.mrb[0].mxu0
        %v816 = vadd.f32 %v742, %v815
        %817 = vdwg.mxu0
        %v818 = vmax.f32 %v814, 0.0
        %v819 = vmax.f32 %v816, 0.0
        %820 = vmatprep.subr.mxu0 0.0
        %821 = vmatpush1.msra.mxu0 %v471
        %822 = vmatprep.subr.mxu0 0.0
        %823 = vmatpush1.msra.mxu0 %v472
        %824 = vmatprep.subr.mxu0 0.0
        %825 = vmatpush1.msra.mxu0 %v473
        %826 = vmatprep.subr.mxu0 0.0
        %827 = vmatpush1.msra.mxu0 %v474
        %828 = vmatprep.subr.mxu0 0.0
        %829 = vmatpush1.msra.mxu0 %v475
        %830 = vmatprep.subr.mxu0 0.0
        %831 = vmatpush1.msra.mxu0 %v476
        %832 = vmatprep.subr.mxu0 0.0
        %833 = vmatpush1.msra.mxu0 %v477
        %834 = vmatprep.subr.mxu0 0.0
        %835 = vmatpush1.msra.mxu0 %v478
        %836 = vmatprep.subr.mxu0 0.0
        %837 = vmatpush1.msra.mxu0 %v479
        %838 = vmatprep.subr.mxu0 0.0
        %839 = vmatpush1.msra.mxu0 %v480
        %840 = vmatprep.subr.mxu0 0.0
        %841 = vmatpush1.msra.mxu0 %v481
        %842 = vmatprep.subr.mxu0 0.0
        %843 = vmatpush1.msra.mxu0 %v482
        %844 = vmatprep.subr.mxu0 0.0
        %845 = vmatpush1.msra.mxu0 %v483
        %846 = vmatprep.subr.mxu0 0.0
        %847 = vmatpush1.msra.mxu0 %v484
        %848 = vmatprep.subr.mxu0 0.0
        %849 = vmatpush1.msra.mxu0 %v485
        %850 = vmatprep.subr.mxu0 0.0
        %851 = vmatpush1.msra.mxu0 %v486
        %852 = vmatprep.subr.mxu0 0.0
        %853 = vmatpush1.msra.mxu0 %v487
        %854 = vmatprep.subr.mxu0 0.0
        %855 = vmatpush1.msra.mxu0 %v488
        %856 = vmatprep.subr.mxu0 0.0
        %857 = vmatpush1.msra.mxu0 %v489
        %858 = vmatprep.subr.mxu0 0.0
        %859 = vmatpush1.msra.mxu0 %v490
        %860 = vmatprep.subr.mxu0 0.0
        %861 = vmatpush1.msra.mxu0 %v491
        %862 = vmatprep.subr.mxu0 0.0
        %863 = vmatpush1.msra.mxu0 %v492
        %864 = vmatprep.subr.mxu0 0.0
        %865 = vmatpush1.msra.mxu0 %v493
        %866 = vmatprep.subr.mxu0 0.0
        %867 = vmatpush1.msra.mxu0 %v494
        %868 = vmatprep.subr.mxu0 0.0
        %869 = vmatpush1.msra.mxu0 %v495
        %870 = vmatprep.subr.mxu0 0.0
        %871 = vmatpush1.msra.mxu0 %v496
        %872 = vmatprep.subr.mxu0 0.0
        %873 = vmatpush1.msra.mxu0 %v497
        %874 = vmatprep.subr.mxu0 0.0
        %875 = vmatpush1.msra.mxu0 %v498
        %876 = vmatprep.subr.mxu0 0.0
        %877 = vmatpush1.msra.mxu0 %v499
        %878 = vmatprep.subr.mxu0 0.0
        %879 = vmatpush1.msra.mxu0 %v500
        %880 = vmatprep.subr.mxu0 0.0
        %881 = vmatpush1.msra.mxu0 %v501
        %882 = vmatprep.subr.mxu0 0.0
        %883 = vmatpush1.msra.mxu0 %v502
        %884 = vmatprep.mubr.f32.mxu0 %v819
        %885 = vmatmul.mubr.f32.gmra.mrb[0].mxu0 %v818
        %v886 = vpop.f32.mrb[0].mxu0
        %v887 = vadd.f32 0.0, %v886
        %v888 = vpop.f32.mrb[0].mxu0
        %889 = vdwg.mxu0
        %v890 = vld [vmem:[%s6] sm:$0xff]
        %v891 = vld [vmem:[%s7] sm:$0xff]
        %893 = vset.pattern.permute.xlu0 0
        %894 = vperm.xlu0 %893, %v891
        %v895 = vpop.permute.xlu0 %894
        %vm897 = vcmask 130048
        %v899 = vsel %vm897, %v890, 0
        %901 = vmatprep.subr.mxu0 %v468
        %902 = vmatpush1.msra.mxu0 %v467
        %903 = vmatprep.subr.mxu0 %v470
        %904 = vmatpush1.msra.mxu0 %v469
        %905 = vmatprep.subr.mxu0 0.0
        %906 = vmatpush1.msra.mxu0 0.0
        %907 = vmatprep.subr.mxu0 0.0
        %908 = vmatpush1.msra.mxu0 0.0
        %909 = vmatprep.subr.mxu0 0.0
        %910 = vmatpush1.msra.mxu0 0.0
        %911 = vmatprep.subr.mxu0 0.0
        %912 = vmatpush1.msra.mxu0 0.0
        %913 = vmatprep.subr.mxu0 0.0
        %914 = vmatpush1.msra.mxu0 0.0
        %915 = vmatprep.subr.mxu0 0.0
        %916 = vmatpush1.msra.mxu0 0.0
        %917 = vmatprep.subr.mxu0 0.0
        %918 = vmatpush1.msra.mxu0 0.0
        %919 = vmatprep.subr.mxu0 0.0
        %920 = vmatpush1.msra.mxu0 0.0
        %921 = vmatprep.subr.mxu0 0.0
        %922 = vmatpush1.msra.mxu0 0.0
        %923 = vmatprep.subr.mxu0 0.0
        %924 = vmatpush1.msra.mxu0 0.0
        %925 = vmatprep.subr.mxu0 0.0
        %926 = vmatpush1.msra.mxu0 0.0
        %927 = vmatprep.subr.mxu0 0.0
        %928 = vmatpush1.msra.mxu0 0.0
        %929 = vmatprep.subr.mxu0 0.0
        %930 = vmatpush1.msra.mxu0 0.0
        %931 = vmatprep.subr.mxu0 0.0
        %932 = vmatpush1.msra.mxu0 0.0
        %933 = vmatprep.subr.mxu0 0.0
        %934 = vmatpush1.msra.mxu0 0.0
        %935 = vmatprep.subr.mxu0 0.0
        %936 = vmatpush1.msra.mxu0 0.0
        %937 = vmatprep.subr.mxu0 0.0
        %938 = vmatpush1.msra.mxu0 0.0
        %939 = vmatprep.subr.mxu0 0.0
        %940 = vmatpush1.msra.mxu0 0.0
        %941 = vmatprep.subr.mxu0 0.0
        %942 = vmatpush1.msra.mxu0 0.0
        %943 = vmatprep.subr.mxu0 0.0
        %944 = vmatpush1.msra.mxu0 0.0
        %945 = vmatprep.subr.mxu0 0.0
        %946 = vmatpush1.msra.mxu0 0.0
        %947 = vmatprep.subr.mxu0 0.0
        %948 = vmatpush1.msra.mxu0 0.0
        %949 = vmatprep.subr.mxu0 0.0
        %950 = vmatpush1.msra.mxu0 0.0
        %951 = vmatprep.subr.mxu0 0.0
        %952 = vmatpush1.msra.mxu0 0.0
        %953 = vmatprep.subr.mxu0 0.0
        %954 = vmatpush1.msra.mxu0 0.0
        %955 = vmatprep.subr.mxu0 0.0
        %956 = vmatpush1.msra.mxu0 0.0
        %957 = vmatprep.subr.mxu0 0.0
        %958 = vmatpush1.msra.mxu0 0.0
        %959 = vmatprep.subr.mxu0 0.0
        %960 = vmatpush1.msra.mxu0 0.0
        %961 = vmatprep.subr.mxu0 0.0
        %962 = vmatpush1.msra.mxu0 0.0
        %963 = vmatprep.subr.mxu0 0.0
        %964 = vmatpush1.msra.mxu0 0.0
        %965 = vmatprep.mubr.f32.mxu0 0.0
        %966 = vmatmul.mubr.f32.gmra.mrb[0].mxu0 %v899
        %v967 = vpop.f32.mrb[0].mxu0
        %v968 = vadd.f32 %v895, %v967
        %v969 = vpop.f32.mrb[0].mxu0
        %v970 = vadd.f32 %v895, %v969
        %971 = vdwg.mxu0
        %v972 = vmax.f32 %v968, 0.0
        %v973 = vmax.f32 %v970, 0.0
        %v974 = vld [vmem:[%s3] sm:$0x1]
        %v976 = vlaneseq
        %v977 = vshrl.u32 %v976, 7
        %v978 = vsub.s32 0, %v977
        %v979 = vrot.slane %v974, %v978
        %981 = vxpose.xlu0.b32.start [1/16] %v972, 128
        %982 = vxpose.xlu0.b32.cont [2/16] 0.0, 128
        %983 = vxpose.xlu0.b32.cont [3/16] 0.0, 128
        %984 = vxpose.xlu0.b32.cont [4/16] 0.0, 128
        %985 = vxpose.xlu0.b32.cont [5/16] 0.0, 128
        %986 = vxpose.xlu0.b32.cont [6/16] 0.0, 128
        %987 = vxpose.xlu0.b32.cont [7/16] 0.0, 128
        %988 = vxpose.xlu0.b32.cont [8/16] 0.0, 128
        %989 = vxpose.xlu0.b32.cont [9/16] 0.0, 128
        %990 = vxpose.xlu0.b32.cont [10/16] 0.0, 128
        %991 = vxpose.xlu0.b32.cont [11/16] 0.0, 128
        %992 = vxpose.xlu0.b32.cont [12/16] 0.0, 128
        %993 = vxpose.xlu0.b32.cont [13/16] 0.0, 128
        %994 = vxpose.xlu0.b32.cont [14/16] 0.0, 128
        %995 = vxpose.xlu0.b32.cont [15/16] 0.0, 128
        %996 = vxpose.xlu0.b32.end [16/16] 0.0, 128
        %v997 = vpop.trf.xlu0
        %v998 = vpop.trf.xlu0
        %v999 = vpop.trf.xlu0
        %v1000 = vpop.trf.xlu0
        %v1001 = vpop.trf.xlu0
        %v1002 = vpop.trf.xlu0
        %v1003 = vpop.trf.xlu0
        %v1004 = vpop.trf.xlu0
        %v1005 = vpop.trf.xlu0
        %v1006 = vpop.trf.xlu0
        %v1007 = vpop.trf.xlu0
        %v1008 = vpop.trf.xlu0
        %v1009 = vpop.trf.xlu0
        %v1010 = vpop.trf.xlu0
        %v1011 = vpop.trf.xlu0
        %v1012 = vpop.trf.xlu0
        %1013 = vxpose.xlu0.b32.start [1/16] %v973, 128
        %1014 = vxpose.xlu0.b32.cont [2/16] 0.0, 128
        %1015 = vxpose.xlu0.b32.cont [3/16] 0.0, 128
        %1016 = vxpose.xlu0.b32.cont [4/16] 0.0, 128
        %1017 = vxpose.xlu0.b32.cont [5/16] 0.0, 128
        %1018 = vxpose.xlu0.b32.cont [6/16] 0.0, 128
        %1019 = vxpose.xlu0.b32.cont [7/16] 0.0, 128
        %1020 = vxpose.xlu0.b32.cont [8/16] 0.0, 128
        %1021 = vxpose.xlu0.b32.cont [9/16] 0.0, 128
        %1022 = vxpose.xlu0.b32.cont [10/16] 0.0, 128
        %1023 = vxpose.xlu0.b32.cont [11/16] 0.0, 128
        %1024 = vxpose.xlu0.b32.cont [12/16] 0.0, 128
        %1025 = vxpose.xlu0.b32.cont [13/16] 0.0, 128
        %1026 = vxpose.xlu0.b32.cont [14/16] 0.0, 128
        %1027 = vxpose.xlu0.b32.cont [15/16] 0.0, 128
        %1028 = vxpose.xlu0.b32.end [16/16] 0.0, 128
        %v1029 = vpop.trf.xlu0
        %v1030 = vpop.trf.xlu0
        %v1031 = vpop.trf.xlu0
        %v1032 = vpop.trf.xlu0
        %v1033 = vpop.trf.xlu0
        %v1034 = vpop.trf.xlu0
        %v1035 = vpop.trf.xlu0
        %v1036 = vpop.trf.xlu0
        %v1037 = vpop.trf.xlu0
        %v1038 = vpop.trf.xlu0
        %v1039 = vpop.trf.xlu0
        %v1040 = vpop.trf.xlu0
        %v1041 = vpop.trf.xlu0
        %v1042 = vpop.trf.xlu0
        %v1043 = vpop.trf.xlu0
        %v1044 = vpop.trf.xlu0
        %v1046 = vsel %vm580, %v997, 0
        %v1049 = vsel %vm580, %v998, 0
        %v1052 = vsel %vm580, %v999, 0
        %v1055 = vsel %vm580, %v1000, 0
        %v1058 = vsel %vm580, %v1001, 0
        %v1061 = vsel %vm580, %v1002, 0
        %v1064 = vsel %vm580, %v1003, 0
        %v1067 = vsel %vm580, %v1004, 0
        %v1070 = vsel %vm580, %v1005, 0
        %v1073 = vsel %vm580, %v1006, 0
        %v1076 = vsel %vm580, %v1007, 0
        %v1079 = vsel %vm580, %v1008, 0
        %v1082 = vsel %vm580, %v1009, 0
        %v1085 = vsel %vm580, %v1010, 0
        %v1088 = vsel %vm580, %v1011, 0
        %v1091 = vsel %vm580, %v1012, 0
        %v1094 = vsel %vm580, %v1029, 0
        %v1097 = vsel %vm580, %v1030, 0
        %v1100 = vsel %vm580, %v1031, 0
        %v1103 = vsel %vm580, %v1032, 0
        %v1106 = vsel %vm580, %v1033, 0
        %v1109 = vsel %vm580, %v1034, 0
        %v1112 = vsel %vm580, %v1035, 0
        %v1115 = vsel %vm580, %v1036, 0
        %v1118 = vsel %vm580, %v1037, 0
        %v1121 = vsel %vm580, %v1038, 0
        %v1124 = vsel %vm580, %v1039, 0
        %v1127 = vsel %vm580, %v1040, 0
        %v1130 = vsel %vm580, %v1041, 0
        %v1133 = vsel %vm580, %v1042, 0
        %v1136 = vsel %vm580, %v1043, 0
        %v1139 = vsel %vm580, %v1044, 0
        %1141 = vmatprep.subr.mxu0 0.0
        %1142 = vmatpush1.msra.mxu0 %v887
        %1143 = vmatprep.subr.mxu0 0.0
        %1144 = vmatpush1.msra.mxu0 0.0
        %1145 = vmatprep.subr.mxu0 0.0
        %1146 = vmatpush1.msra.mxu0 0.0
        %1147 = vmatprep.subr.mxu0 0.0
        %1148 = vmatpush1.msra.mxu0 0.0
        %1149 = vmatprep.subr.mxu0 0.0
        %1150 = vmatpush1.msra.mxu0 0.0
        %1151 = vmatprep.subr.mxu0 0.0
        %1152 = vmatpush1.msra.mxu0 0.0
        %1153 = vmatprep.subr.mxu0 0.0
        %1154 = vmatpush1.msra.mxu0 0.0
        %1155 = vmatprep.subr.mxu0 0.0
        %1156 = vmatpush1.msra.mxu0 0.0
        %1157 = vmatprep.subr.mxu0 0.0
        %1158 = vmatpush1.msra.mxu0 0.0
        %1159 = vmatprep.subr.mxu0 0.0
        %1160 = vmatpush1.msra.mxu0 0.0
        %1161 = vmatprep.subr.mxu0 0.0
        %1162 = vmatpush1.msra.mxu0 0.0
        %1163 = vmatprep.subr.mxu0 0.0
        %1164 = vmatpush1.msra.mxu0 0.0
        %1165 = vmatprep.subr.mxu0 0.0
        %1166 = vmatpush1.msra.mxu0 0.0
        %1167 = vmatprep.subr.mxu0 0.0
        %1168 = vmatpush1.msra.mxu0 0.0
        %1169 = vmatprep.subr.mxu0 0.0
        %1170 = vmatpush1.msra.mxu0 0.0
        %1171 = vmatprep.subr.mxu0 0.0
        %1172 = vmatpush1.msra.mxu0 0.0
        %1173 = vmatprep.subr.mxu0 0.0
        %1174 = vmatpush1.msra.mxu0 0.0
        %1175 = vmatprep.subr.mxu0 0.0
        %1176 = vmatpush1.msra.mxu0 0.0
        %1177 = vmatprep.subr.mxu0 0.0
        %1178 = vmatpush1.msra.mxu0 0.0
        %1179 = vmatprep.subr.mxu0 0.0
        %1180 = vmatpush1.msra.mxu0 0.0
        %1181 = vmatprep.subr.mxu0 0.0
        %1182 = vmatpush1.msra.mxu0 0.0
        %1183 = vmatprep.subr.mxu0 0.0
        %1184 = vmatpush1.msra.mxu0 0.0
        %1185 = vmatprep.subr.mxu0 0.0
        %1186 = vmatpush1.msra.mxu0 0.0
        %1187 = vmatprep.subr.mxu0 0.0
        %1188 = vmatpush1.msra.mxu0 0.0
        %1189 = vmatprep.subr.mxu0 0.0
        %1190 = vmatpush1.msra.mxu0 0.0
        %1191 = vmatprep.subr.mxu0 0.0
        %1192 = vmatpush1.msra.mxu0 0.0
        %1193 = vmatprep.subr.mxu0 0.0
        %1194 = vmatpush1.msra.mxu0 0.0
        %1195 = vmatprep.subr.mxu0 0.0
        %1196 = vmatpush1.msra.mxu0 0.0
        %1197 = vmatprep.subr.mxu0 0.0
        %1198 = vmatpush1.msra.mxu0 0.0
        %1199 = vmatprep.subr.mxu0 0.0
        %1200 = vmatpush1.msra.mxu0 0.0
        %1201 = vmatprep.subr.mxu0 0.0
        %1202 = vmatpush1.msra.mxu0 0.0
        %1203 = vmatprep.subr.mxu0 0.0
        %1204 = vmatpush1.msra.mxu0 0.0
        %1205 = vmatprep.mubr.f32.mxu0 0.0
        %1206 = vmatmul.mubr.f32.gmra.mrb[0].mxu0 %v1046
        %v1207 = vpop.f32.mrb[0].mxu0
        %v1208 = vadd.f32 %v979, %v1207
        %v1209 = vpop.f32.mrb[0].mxu0
        %1210 = vmatprep.mubr.f32.mxu0 0.0
        %1211 = vmatmul.mubr.f32.gmra.mrb[0].mxu0 %v1049
        %v1212 = vpop.f32.mrb[0].mxu0
        %v1213 = vadd.f32 %v979, %v1212
        %v1214 = vpop.f32.mrb[0].mxu0
        %1215 = vmatprep.mubr.f32.mxu0 0.0
        %1216 = vmatmul.mubr.f32.gmra.mrb[0].mxu0 %v1052
        %v1217 = vpop.f32.mrb[0].mxu0
        %v1218 = vadd.f32 %v979, %v1217
        %v1219 = vpop.f32.mrb[0].mxu0
        %1220 = vmatprep.mubr.f32.mxu0 0.0
        %1221 = vmatmul.mubr.f32.gmra.mrb[0].mxu0 %v1055
        %v1222 = vpop.f32.mrb[0].mxu0
        %v1223 = vadd.f32 %v979, %v1222
        %v1224 = vpop.f32.mrb[0].mxu0
        %1225 = vmatprep.mubr.f32.mxu0 0.0
        %1226 = vmatmul.mubr.f32.gmra.mrb[0].mxu0 %v1058
        %v1227 = vpop.f32.mrb[0].mxu0
        %v1228 = vadd.f32 %v979, %v1227
        %v1229 = vpop.f32.mrb[0].mxu0
        %1230 = vmatprep.mubr.f32.mxu0 0.0
        %1231 = vmatmul.mubr.f32.gmra.mrb[0].mxu0 %v1061
        %v1232 = vpop.f32.mrb[0].mxu0
        %v1233 = vadd.f32 %v979, %v1232
        %v1234 = vpop.f32.mrb[0].mxu0
        %1235 = vmatprep.mubr.f32.mxu0 0.0
        %1236 = vmatmul.mubr.f32.gmra.mrb[0].mxu0 %v1064
        %v1237 = vpop.f32.mrb[0].mxu0
        %v1238 = vadd.f32 %v979, %v1237
        %v1239 = vpop.f32.mrb[0].mxu0
        %1240 = vmatprep.mubr.f32.mxu0 0.0
        %1241 = vmatmul.mubr.f32.gmra.mrb[0].mxu0 %v1067
        %v1242 = vpop.f32.mrb[0].mxu0
        %v1243 = vadd.f32 %v979, %v1242
        %v1244 = vpop.f32.mrb[0].mxu0
        %1245 = vmatprep.mubr.f32.mxu0 0.0
        %1246 = vmatmul.mubr.f32.gmra.mrb[0].mxu0 %v1070
        %v1247 = vpop.f32.mrb[0].mxu0
        %v1248 = vadd.f32 %v979, %v1247
        %v1249 = vpop.f32.mrb[0].mxu0
        %1250 = vmatprep.mubr.f32.mxu0 0.0
        %1251 = vmatmul.mubr.f32.gmra.mrb[0].mxu0 %v1073
        %v1252 = vpop.f32.mrb[0].mxu0
        %v1253 = vadd.f32 %v979, %v1252
        %v1254 = vpop.f32.mrb[0].mxu0
        %1255 = vmatprep.mubr.f32.mxu0 0.0
        %1256 = vmatmul.mubr.f32.gmra.mrb[0].mxu0 %v1076
        %v1257 = vpop.f32.mrb[0].mxu0
        %v1258 = vadd.f32 %v979, %v1257
        %v1259 = vpop.f32.mrb[0].mxu0
        %1260 = vmatprep.mubr.f32.mxu0 0.0
        %1261 = vmatmul.mubr.f32.gmra.mrb[0].mxu0 %v1079
        %v1262 = vpop.f32.mrb[0].mxu0
        %v1263 = vadd.f32 %v979, %v1262
        %v1264 = vpop.f32.mrb[0].mxu0
        %1265 = vmatprep.mubr.f32.mxu0 0.0
        %1266 = vmatmul.mubr.f32.gmra.mrb[0].mxu0 %v1082
        %v1267 = vpop.f32.mrb[0].mxu0
        %v1268 = vadd.f32 %v979, %v1267
        %v1269 = vpop.f32.mrb[0].mxu0
        %1270 = vmatprep.mubr.f32.mxu0 0.0
        %1271 = vmatmul.mubr.f32.gmra.mrb[0].mxu0 %v1085
        %v1272 = vpop.f32.mrb[0].mxu0
        %v1273 = vadd.f32 %v979, %v1272
        %v1274 = vpop.f32.mrb[0].mxu0
        %1275 = vmatprep.mubr.f32.mxu0 0.0
        %1276 = vmatmul.mubr.f32.gmra.mrb[0].mxu0 %v1088
        %v1277 = vpop.f32.mrb[0].mxu0
        %v1278 = vadd.f32 %v979, %v1277
        %v1279 = vpop.f32.mrb[0].mxu0
        %1280 = vmatprep.mubr.f32.mxu0 0.0
        %1281 = vmatmul.mubr.f32.gmra.mrb[0].mxu0 %v1091
        %v1282 = vpop.f32.mrb[0].mxu0
        %v1283 = vadd.f32 %v979, %v1282
        %v1284 = vpop.f32.mrb[0].mxu0
        %1285 = vmatprep.mubr.f32.mxu0 0.0
        %1286 = vmatmul.mubr.f32.gmra.mrb[0].mxu0 %v1094
        %v1287 = vpop.f32.mrb[0].mxu0
        %v1288 = vadd.f32 %v979, %v1287
        %v1289 = vpop.f32.mrb[0].mxu0
        %1290 = vmatprep.mubr.f32.mxu0 0.0
        %1291 = vmatmul.mubr.f32.gmra.mrb[0].mxu0 %v1097
        %v1292 = vpop.f32.mrb[0].mxu0
        %v1293 = vadd.f32 %v979, %v1292
        %v1294 = vpop.f32.mrb[0].mxu0
        %1295 = vmatprep.mubr.f32.mxu0 0.0
        %1296 = vmatmul.mubr.f32.gmra.mrb[0].mxu0 %v1100
        %v1297 = vpop.f32.mrb[0].mxu0
        %v1298 = vadd.f32 %v979, %v1297
        %v1299 = vpop.f32.mrb[0].mxu0
        %1300 = vmatprep.mubr.f32.mxu0 0.0
        %1301 = vmatmul.mubr.f32.gmra.mrb[0].mxu0 %v1103
        %v1302 = vpop.f32.mrb[0].mxu0
        %v1303 = vadd.f32 %v979, %v1302
        %v1304 = vpop.f32.mrb[0].mxu0
        %1305 = vmatprep.mubr.f32.mxu0 0.0
        %1306 = vmatmul.mubr.f32.gmra.mrb[0].mxu0 %v1106
        %v1307 = vpop.f32.mrb[0].mxu0
        %v1308 = vadd.f32 %v979, %v1307
        %v1309 = vpop.f32.mrb[0].mxu0
        %1310 = vmatprep.mubr.f32.mxu0 0.0
        %1311 = vmatmul.mubr.f32.gmra.mrb[0].mxu0 %v1109
        %v1312 = vpop.f32.mrb[0].mxu0
        %v1313 = vadd.f32 %v979, %v1312
        %v1314 = vpop.f32.mrb[0].mxu0
        %1315 = vmatprep.mubr.f32.mxu0 0.0
        %1316 = vmatmul.mubr.f32.gmra.mrb[0].mxu0 %v1112
        %v1317 = vpop.f32.mrb[0].mxu0
        %v1318 = vadd.f32 %v979, %v1317
        %v1319 = vpop.f32.mrb[0].mxu0
        %1320 = vmatprep.mubr.f32.mxu0 0.0
        %1321 = vmatmul.mubr.f32.gmra.mrb[0].mxu0 %v1115
        %v1322 = vpop.f32.mrb[0].mxu0
        %v1323 = vadd.f32 %v979, %v1322
        %v1324 = vpop.f32.mrb[0].mxu0
        %1325 = vmatprep.mubr.f32.mxu0 0.0
        %1326 = vmatmul.mubr.f32.gmra.mrb[0].mxu0 %v1118
        %v1327 = vpop.f32.mrb[0].mxu0
        %v1328 = vadd.f32 %v979, %v1327
        %v1329 = vpop.f32.mrb[0].mxu0
        %1330 = vmatprep.mubr.f32.mxu0 0.0
        %1331 = vmatmul.mubr.f32.gmra.mrb[0].mxu0 %v1121
        %v1332 = vpop.f32.mrb[0].mxu0
        %v1333 = vadd.f32 %v979, %v1332
        %v1334 = vpop.f32.mrb[0].mxu0
        %1335 = vmatprep.mubr.f32.mxu0 0.0
        %1336 = vmatmul.mubr.f32.gmra.mrb[0].mxu0 %v1124
        %v1337 = vpop.f32.mrb[0].mxu0
        %v1338 = vadd.f32 %v979, %v1337
        %v1339 = vpop.f32.mrb[0].mxu0
        %1340 = vmatprep.mubr.f32.mxu0 0.0
        %1341 = vmatmul.mubr.f32.gmra.mrb[0].mxu0 %v1127
        %v1342 = vpop.f32.mrb[0].mxu0
        %v1343 = vadd.f32 %v979, %v1342
        %v1344 = vpop.f32.mrb[0].mxu0
        %1345 = vmatprep.mubr.f32.mxu0 0.0
        %1346 = vmatmul.mubr.f32.gmra.mrb[0].mxu0 %v1130
        %v1347 = vpop.f32.mrb[0].mxu0
        %v1348 = vadd.f32 %v979, %v1347
        %v1349 = vpop.f32.mrb[0].mxu0
        %1350 = vmatprep.mubr.f32.mxu0 0.0
        %1351 = vmatmul.mubr.f32.gmra.mrb[0].mxu0 %v1133
        %v1352 = vpop.f32.mrb[0].mxu0
        %v1353 = vadd.f32 %v979, %v1352
        %v1354 = vpop.f32.mrb[0].mxu0
        %1355 = vmatprep.mubr.f32.mxu0 0.0
        %1356 = vmatmul.mubr.f32.gmra.mrb[0].mxu0 %v1136
        %v1357 = vpop.f32.mrb[0].mxu0
        %v1358 = vadd.f32 %v979, %v1357
        %v1359 = vpop.f32.mrb[0].mxu0
        %1360 = vmatprep.mubr.f32.mxu0 0.0
        %1361 = vmatmul.mubr.f32.gmra.mrb[0].mxu0 %v1139
        %v1362 = vpop.f32.mrb[0].mxu0
        %v1363 = vadd.f32 %v979, %v1362
        %v1364 = vpop.f32.mrb[0].mxu0
        %1365 = vdwg.mxu0
        %1366 = vmax.xlane.f32.xlu0 %v1208
        %v1367 = vpop.xlane.xlu0 %1366
        %1368 = vmax.xlane.f32.xlu0 %v1213
        %v1369 = vpop.xlane.xlu0 %1368
        %1370 = vmax.xlane.f32.xlu0 %v1218
        %v1371 = vpop.xlane.xlu0 %1370
        %1372 = vmax.xlane.f32.xlu0 %v1223
        %v1373 = vpop.xlane.xlu0 %1372
        %1374 = vmax.xlane.f32.xlu0 %v1228
        %v1375 = vpop.xlane.xlu0 %1374
        %1376 = vmax.xlane.f32.xlu0 %v1233
        %v1377 = vpop.xlane.xlu0 %1376
        %1378 = vmax.xlane.f32.xlu0 %v1238
        %v1379 = vpop.xlane.xlu0 %1378
        %1380 = vmax.xlane.f32.xlu0 %v1243
        %v1381 = vpop.xlane.xlu0 %1380
        %1382 = vmax.xlane.f32.xlu0 %v1248
        %v1383 = vpop.xlane.xlu0 %1382
        %1384 = vmax.xlane.f32.xlu0 %v1253
        %v1385 = vpop.xlane.xlu0 %1384
        %1386 = vmax.xlane.f32.xlu0 %v1258
        %v1387 = vpop.xlane.xlu0 %1386
        %1388 = vmax.xlane.f32.xlu0 %v1263
        %v1389 = vpop.xlane.xlu0 %1388
        %1390 = vmax.xlane.f32.xlu0 %v1268
        %v1391 = vpop.xlane.xlu0 %1390
        %1392 = vmax.xlane.f32.xlu0 %v1273
        %v1393 = vpop.xlane.xlu0 %1392
        %1394 = vmax.xlane.f32.xlu0 %v1278
        %v1395 = vpop.xlane.xlu0 %1394
        %1396 = vmax.xlane.f32.xlu0 %v1283
        %v1397 = vpop.xlane.xlu0 %1396
        %1398 = vmax.xlane.f32.xlu0 %v1288
        %v1399 = vpop.xlane.xlu0 %1398
        %1400 = vmax.xlane.f32.xlu0 %v1293
        %v1401 = vpop.xlane.xlu0 %1400
        %1402 = vmax.xlane.f32.xlu0 %v1298
        %v1403 = vpop.xlane.xlu0 %1402
        %1404 = vmax.xlane.f32.xlu0 %v1303
        %v1405 = vpop.xlane.xlu0 %1404
        %1406 = vmax.xlane.f32.xlu0 %v1308
        %v1407 = vpop.xlane.xlu0 %1406
        %1408 = vmax.xlane.f32.xlu0 %v1313
        %v1409 = vpop.xlane.xlu0 %1408
        %1410 = vmax.xlane.f32.xlu0 %v1318
        %v1411 = vpop.xlane.xlu0 %1410
        %1412 = vmax.xlane.f32.xlu0 %v1323
        %v1413 = vpop.xlane.xlu0 %1412
        %1414 = vmax.xlane.f32.xlu0 %v1328
        %v1415 = vpop.xlane.xlu0 %1414
        %1416 = vmax.xlane.f32.xlu0 %v1333
        %v1417 = vpop.xlane.xlu0 %1416
        %1418 = vmax.xlane.f32.xlu0 %v1338
        %v1419 = vpop.xlane.xlu0 %1418
        %1420 = vmax.xlane.f32.xlu0 %v1343
        %v1421 = vpop.xlane.xlu0 %1420
        %1422 = vmax.xlane.f32.xlu0 %v1348
        %v1423 = vpop.xlane.xlu0 %1422
        %1424 = vmax.xlane.f32.xlu0 %v1353
        %v1425 = vpop.xlane.xlu0 %1424
        %1426 = vmax.xlane.f32.xlu0 %v1358
        %v1427 = vpop.xlane.xlu0 %1426
        %1428 = vmax.xlane.f32.xlu0 %v1363
        %v1429 = vpop.xlane.xlu0 %1428
        %v1430 = vsub.f32 %v1208, %v1367
        %v1431 = vsub.f32 %v1213, %v1369
        %v1432 = vsub.f32 %v1218, %v1371
        %v1433 = vsub.f32 %v1223, %v1373
        %v1434 = vsub.f32 %v1228, %v1375
        %v1435 = vsub.f32 %v1233, %v1377
        %v1436 = vsub.f32 %v1238, %v1379
        %v1437 = vsub.f32 %v1243, %v1381
        %v1438 = vsub.f32 %v1248, %v1383
        %v1439 = vsub.f32 %v1253, %v1385
        %v1440 = vsub.f32 %v1258, %v1387
        %v1441 = vsub.f32 %v1263, %v1389
        %v1442 = vsub.f32 %v1268, %v1391
        %v1443 = vsub.f32 %v1273, %v1393
        %v1444 = vsub.f32 %v1278, %v1395
        %v1445 = vsub.f32 %v1283, %v1397
        %v1446 = vsub.f32 %v1288, %v1399
        %v1447 = vsub.f32 %v1293, %v1401
        %v1448 = vsub.f32 %v1298, %v1403
        %v1449 = vsub.f32 %v1303, %v1405
        %v1450 = vsub.f32 %v1308, %v1407
        %v1451 = vsub.f32 %v1313, %v1409
        %v1452 = vsub.f32 %v1318, %v1411
        %v1453 = vsub.f32 %v1323, %v1413
        %v1454 = vsub.f32 %v1328, %v1415
        %v1455 = vsub.f32 %v1333, %v1417
        %v1456 = vsub.f32 %v1338, %v1419
        %v1457 = vsub.f32 %v1343, %v1421
        %v1458 = vsub.f32 %v1348, %v1423
        %v1459 = vsub.f32 %v1353, %v1425
        %v1460 = vsub.f32 %v1358, %v1427
        %v1461 = vsub.f32 %v1363, %v1429
        %v1462 = vmul.f32 %v1430, 1.442695
        %v1463 = vpow.pop %v1462
        %v1464 = vmul.f32 %v1431, 1.442695
        %v1465 = vpow.pop %v1464
        %v1466 = vmul.f32 %v1432, 1.442695
        %v1467 = vpow.pop %v1466
        %v1468 = vmul.f32 %v1433, 1.442695
        %v1469 = vpow.pop %v1468
        %v1470 = vmul.f32 %v1434, 1.442695
        %v1471 = vpow.pop %v1470
        %v1472 = vmul.f32 %v1435, 1.442695
        %v1473 = vpow.pop %v1472
        %v1474 = vmul.f32 %v1436, 1.442695
        %v1475 = vpow.pop %v1474
        %v1476 = vmul.f32 %v1437, 1.442695
        %v1477 = vpow.pop %v1476
        %v1478 = vmul.f32 %v1438, 1.442695
        %v1479 = vpow.pop %v1478
        %v1480 = vmul.f32 %v1439, 1.442695
        %v1481 = vpow.pop %v1480
        %v1482 = vmul.f32 %v1440, 1.442695
        %v1483 = vpow.pop %v1482
        %v1484 = vmul.f32 %v1441, 1.442695
        %v1485 = vpow.pop %v1484
        %v1486 = vmul.f32 %v1442, 1.442695
        %v1487 = vpow.pop %v1486
        %v1488 = vmul.f32 %v1443, 1.442695
        %v1489 = vpow.pop %v1488
        %v1490 = vmul.f32 %v1444, 1.442695
        %v1491 = vpow.pop %v1490
        %v1492 = vmul.f32 %v1445, 1.442695
        %v1493 = vpow.pop %v1492
        %v1494 = vmul.f32 %v1446, 1.442695
        %v1495 = vpow.pop %v1494
        %v1496 = vmul.f32 %v1447, 1.442695
        %v1497 = vpow.pop %v1496
        %v1498 = vmul.f32 %v1448, 1.442695
        %v1499 = vpow.pop %v1498
        %v1500 = vmul.f32 %v1449, 1.442695
        %v1501 = vpow.pop %v1500
        %v1502 = vmul.f32 %v1450, 1.442695
        %v1503 = vpow.pop %v1502
        %v1504 = vmul.f32 %v1451, 1.442695
        %v1505 = vpow.pop %v1504
        %v1506 = vmul.f32 %v1452, 1.442695
        %v1507 = vpow.pop %v1506
        %v1508 = vmul.f32 %v1453, 1.442695
        %v1509 = vpow.pop %v1508
        %v1510 = vmul.f32 %v1454, 1.442695
        %v1511 = vpow.pop %v1510
        %v1512 = vmul.f32 %v1455, 1.442695
        %v1513 = vpow.pop %v1512
        %v1514 = vmul.f32 %v1456, 1.442695
        %v1515 = vpow.pop %v1514
        %v1516 = vmul.f32 %v1457, 1.442695
        %v1517 = vpow.pop %v1516
        %v1518 = vmul.f32 %v1458, 1.442695
        %v1519 = vpow.pop %v1518
        %v1520 = vmul.f32 %v1459, 1.442695
        %v1521 = vpow.pop %v1520
        %v1522 = vmul.f32 %v1460, 1.442695
        %v1523 = vpow.pop %v1522
        %v1524 = vmul.f32 %v1461, 1.442695
        %v1525 = vpow.pop %v1524
        %1526 = vadd.xlane.f32.xlu0 %v1463
        %v1527 = vpop.xlane.xlu0 %1526
        %1528 = vadd.xlane.f32.xlu0 %v1465
        %v1529 = vpop.xlane.xlu0 %1528
        %1530 = vadd.xlane.f32.xlu0 %v1467
        %v1531 = vpop.xlane.xlu0 %1530
        %1532 = vadd.xlane.f32.xlu0 %v1469
        %v1533 = vpop.xlane.xlu0 %1532
        %1534 = vadd.xlane.f32.xlu0 %v1471
        %v1535 = vpop.xlane.xlu0 %1534
        %1536 = vadd.xlane.f32.xlu0 %v1473
        %v1537 = vpop.xlane.xlu0 %1536
        %1538 = vadd.xlane.f32.xlu0 %v1475
        %v1539 = vpop.xlane.xlu0 %1538
        %1540 = vadd.xlane.f32.xlu0 %v1477
        %v1541 = vpop.xlane.xlu0 %1540
        %1542 = vadd.xlane.f32.xlu0 %v1479
        %v1543 = vpop.xlane.xlu0 %1542
        %1544 = vadd.xlane.f32.xlu0 %v1481
        %v1545 = vpop.xlane.xlu0 %1544
        %1546 = vadd.xlane.f32.xlu0 %v1483
        %v1547 = vpop.xlane.xlu0 %1546
        %1548 = vadd.xlane.f32.xlu0 %v1485
        %v1549 = vpop.xlane.xlu0 %1548
        %1550 = vadd.xlane.f32.xlu0 %v1487
        %v1551 = vpop.xlane.xlu0 %1550
        %1552 = vadd.xlane.f32.xlu0 %v1489
        %v1553 = vpop.xlane.xlu0 %1552
        %1554 = vadd.xlane.f32.xlu0 %v1491
        %v1555 = vpop.xlane.xlu0 %1554
        %1556 = vadd.xlane.f32.xlu0 %v1493
        %v1557 = vpop.xlane.xlu0 %1556
        %1558 = vadd.xlane.f32.xlu0 %v1495
        %v1559 = vpop.xlane.xlu0 %1558
        %1560 = vadd.xlane.f32.xlu0 %v1497
        %v1561 = vpop.xlane.xlu0 %1560
        %1562 = vadd.xlane.f32.xlu0 %v1499
        %v1563 = vpop.xlane.xlu0 %1562
        %1564 = vadd.xlane.f32.xlu0 %v1501
        %v1565 = vpop.xlane.xlu0 %1564
        %1566 = vadd.xlane.f32.xlu0 %v1503
        %v1567 = vpop.xlane.xlu0 %1566
        %1568 = vadd.xlane.f32.xlu0 %v1505
        %v1569 = vpop.xlane.xlu0 %1568
        %1570 = vadd.xlane.f32.xlu0 %v1507
        %v1571 = vpop.xlane.xlu0 %1570
        %1572 = vadd.xlane.f32.xlu0 %v1509
        %v1573 = vpop.xlane.xlu0 %1572
        %1574 = vadd.xlane.f32.xlu0 %v1511
        %v1575 = vpop.xlane.xlu0 %1574
        %1576 = vadd.xlane.f32.xlu0 %v1513
        %v1577 = vpop.xlane.xlu0 %1576
        %1578 = vadd.xlane.f32.xlu0 %v1515
        %v1579 = vpop.xlane.xlu0 %1578
        %1580 = vadd.xlane.f32.xlu0 %v1517
        %v1581 = vpop.xlane.xlu0 %1580
        %1582 = vadd.xlane.f32.xlu0 %v1519
        %v1583 = vpop.xlane.xlu0 %1582
        %1584 = vadd.xlane.f32.xlu0 %v1521
        %v1585 = vpop.xlane.xlu0 %1584
        %1586 = vadd.xlane.f32.xlu0 %v1523
        %v1587 = vpop.xlane.xlu0 %1586
        %1588 = vadd.xlane.f32.xlu0 %v1525
        %v1589 = vpop.xlane.xlu0 %1588
        %v1590 = vrcp.pop %v1527
        %v1591 = vrcp.pop %v1529
        %v1592 = vrcp.pop %v1531
        %v1593 = vrcp.pop %v1533
        %v1594 = vrcp.pop %v1535
        %v1595 = vrcp.pop %v1537
        %v1596 = vrcp.pop %v1539
        %v1597 = vrcp.pop %v1541
        %v1598 = vrcp.pop %v1543
        %v1599 = vrcp.pop %v1545
        %v1600 = vrcp.pop %v1547
        %v1601 = vrcp.pop %v1549
        %v1602 = vrcp.pop %v1551
        %v1603 = vrcp.pop %v1553
        %v1604 = vrcp.pop %v1555
        %v1605 = vrcp.pop %v1557
        %v1606 = vrcp.pop %v1559
        %v1607 = vrcp.pop %v1561
        %v1608 = vrcp.pop %v1563
        %v1609 = vrcp.pop %v1565
        %v1610 = vrcp.pop %v1567
        %v1611 = vrcp.pop %v1569
        %v1612 = vrcp.pop %v1571
        %v1613 = vrcp.pop %v1573
        %v1614 = vrcp.pop %v1575
        %v1615 = vrcp.pop %v1577
        %v1616 = vrcp.pop %v1579
        %v1617 = vrcp.pop %v1581
        %v1618 = vrcp.pop %v1583
        %v1619 = vrcp.pop %v1585
        %v1620 = vrcp.pop %v1587
        %v1621 = vrcp.pop %v1589
        %v1622 = vmul.f32 %v1463, %v1590
        %v1623 = vmul.f32 %v1465, %v1591
        %v1624 = vmul.f32 %v1467, %v1592
        %v1625 = vmul.f32 %v1469, %v1593
        %v1626 = vmul.f32 %v1471, %v1594
        %v1627 = vmul.f32 %v1473, %v1595
        %v1628 = vmul.f32 %v1475, %v1596
        %v1629 = vmul.f32 %v1477, %v1597
        %v1630 = vmul.f32 %v1479, %v1598
        %v1631 = vmul.f32 %v1481, %v1599
        %v1632 = vmul.f32 %v1483, %v1600
        %v1633 = vmul.f32 %v1485, %v1601
        %v1634 = vmul.f32 %v1487, %v1602
        %v1635 = vmul.f32 %v1489, %v1603
        %v1636 = vmul.f32 %v1491, %v1604
        %v1637 = vmul.f32 %v1493, %v1605
        %v1638 = vmul.f32 %v1495, %v1606
        %v1639 = vmul.f32 %v1497, %v1607
        %v1640 = vmul.f32 %v1499, %v1608
        %v1641 = vmul.f32 %v1501, %v1609
        %v1642 = vmul.f32 %v1503, %v1610
        %v1643 = vmul.f32 %v1505, %v1611
        %v1644 = vmul.f32 %v1507, %v1612
        %v1645 = vmul.f32 %v1509, %v1613
        %v1646 = vmul.f32 %v1511, %v1614
        %v1647 = vmul.f32 %v1513, %v1615
        %v1648 = vmul.f32 %v1515, %v1616
        %v1649 = vmul.f32 %v1517, %v1617
        %v1650 = vmul.f32 %v1519, %v1618
        %v1651 = vmul.f32 %v1521, %v1619
        %v1652 = vmul.f32 %v1523, %v1620
        %v1653 = vmul.f32 %v1525, %v1621
        %v1654 = vld [vmem:[%s11] sm:$0xff]
        %v1655 = vld [vmem:[%s11 + $0x8] sm:$0xff]
        %1657 = vset.pattern.permute.xlu0 0
        %1658 = vperm.xlu0 %1657, %v1654
        %v1659 = vpop.permute.xlu0 %1658
        %1662 = vset.pattern.permute.xlu0 0
        %1663 = vperm.xlu0 %1662, %v1655
        %v1664 = vpop.permute.xlu0 %1663
        %1666 = vmatprep.subr.mxu0 0.0
        %1667 = vmatpush1.xpose.msra.mxu0 %v1622
        %1668 = vmatprep.subr.mxu0 0.0
        %1669 = vmatpush1.xpose.msra.mxu0 %v1623
        %1670 = vmatprep.subr.mxu0 0.0
        %1671 = vmatpush1.xpose.msra.mxu0 %v1624
        %1672 = vmatprep.subr.mxu0 0.0
        %1673 = vmatpush1.xpose.msra.mxu0 %v1625
        %1674 = vmatprep.subr.mxu0 0.0
        %1675 = vmatpush1.xpose.msra.mxu0 %v1626
        %1676 = vmatprep.subr.mxu0 0.0
        %1677 = vmatpush1.xpose.msra.mxu0 %v1627
        %1678 = vmatprep.subr.mxu0 0.0
        %1679 = vmatpush1.xpose.msra.mxu0 %v1628
        %1680 = vmatprep.subr.mxu0 0.0
        %1681 = vmatpush1.xpose.msra.mxu0 %v1629
        %1682 = vmatprep.subr.mxu0 0.0
        %1683 = vmatpush1.xpose.msra.mxu0 %v1630
        %1684 = vmatprep.subr.mxu0 0.0
        %1685 = vmatpush1.xpose.msra.mxu0 %v1631
        %1686 = vmatprep.subr.mxu0 0.0
        %1687 = vmatpush1.xpose.msra.mxu0 %v1632
        %1688 = vmatprep.subr.mxu0 0.0
        %1689 = vmatpush1.xpose.msra.mxu0 %v1633
        %1690 = vmatprep.subr.mxu0 0.0
        %1691 = vmatpush1.xpose.msra.mxu0 %v1634
        %1692 = vmatprep.subr.mxu0 0.0
        %1693 = vmatpush1.xpose.msra.mxu0 %v1635
        %1694 = vmatprep.subr.mxu0 0.0
        %1695 = vmatpush1.xpose.msra.mxu0 %v1636
        %1696 = vmatprep.subr.mxu0 0.0
        %1697 = vmatpush1.xpose.msra.mxu0 %v1637
        %1698 = vmatprep.subr.mxu0 0.0
        %1699 = vmatpush1.xpose.msra.mxu0 %v1638
        %1700 = vmatprep.subr.mxu0 0.0
        %1701 = vmatpush1.xpose.msra.mxu0 %v1639
        %1702 = vmatprep.subr.mxu0 0.0
        %1703 = vmatpush1.xpose.msra.mxu0 %v1640
        %1704 = vmatprep.subr.mxu0 0.0
        %1705 = vmatpush1.xpose.msra.mxu0 %v1641
        %1706 = vmatprep.subr.mxu0 0.0
        %1707 = vmatpush1.xpose.msra.mxu0 %v1642
        %1708 = vmatprep.subr.mxu0 0.0
        %1709 = vmatpush1.xpose.msra.mxu0 %v1643
        %1710 = vmatprep.subr.mxu0 0.0
        %1711 = vmatpush1.xpose.msra.mxu0 %v1644
        %1712 = vmatprep.subr.mxu0 0.0
        %1713 = vmatpush1.xpose.msra.mxu0 %v1645
        %1714 = vmatprep.subr.mxu0 0.0
        %1715 = vmatpush1.xpose.msra.mxu0 %v1646
        %1716 = vmatprep.subr.mxu0 0.0
        %1717 = vmatpush1.xpose.msra.mxu0 %v1647
        %1718 = vmatprep.subr.mxu0 0.0
        %1719 = vmatpush1.xpose.msra.mxu0 %v1648
        %1720 = vmatprep.subr.mxu0 0.0
        %1721 = vmatpush1.xpose.msra.mxu0 %v1649
        %1722 = vmatprep.subr.mxu0 0.0
        %1723 = vmatpush1.xpose.msra.mxu0 %v1650
        %1724 = vmatprep.subr.mxu0 0.0
        %1725 = vmatpush1.xpose.msra.mxu0 %v1651
        %1726 = vmatprep.subr.mxu0 0.0
        %1727 = vmatpush1.xpose.msra.mxu0 %v1652
        %1728 = vmatprep.subr.mxu0 0.0
        %1729 = vmatpush1.xpose.msra.mxu0 %v1653
        %1730 = vmatprep.mubr.f32.mxu0 0.0
        %1731 = vmatmul.mubr.f32.gmra.mrb[0].mxu0 %v729
        %v1732 = vpop.f32.mrb[0].mxu0
        %v1733 = vadd.f32 %v1659, %v1732
        %v1734 = vpop.f32.mrb[0].mxu0
        %v1735 = vadd.f32 %v1659, %v1734
        %1736 = vmatprep.mubr.f32.mxu0 0.0
        %1737 = vmatmul.mubr.f32.gmra.mrb[0].mxu0 %v734
        %v1738 = vpop.f32.mrb[0].mxu0
        %v1739 = vadd.f32 %v1664, %v1738
        %v1740 = vpop.f32.mrb[0].mxu0
        %v1741 = vadd.f32 %v1664, %v1740
        %1742 = vdwg.mxu0
        %v1743 = vadd.f32 %v1733, %v467
        %v1744 = vadd.f32 %v1735, %v468
        %v1745 = vadd.f32 %v1739, %v469
        %v1746 = vadd.f32 %v1741, %v470
        %1747 = vst [vmem:[%s459] sm:$0xff] %v1743
        %1748 = vst [vmem:[%s459 + $0x8] sm:$0xff] %v1744
        %1749 = vst [vmem:[%s459 + $0x10] sm:$0xff] %v1745
        %1750 = vst [vmem:[%s459 + $0x18] sm:$0xff] %v1746
        %s1751 = sand.u32 %s300, 1
        %s1752 = scalar_lea.sflag [#allocation4], %s1751
        %s1753 = sand.u32 %s300, 1
        %s1754 = smul.addr %s1753, 32
        %s1755 = scalar_lea.vmem [#allocation7], %s1754
        // Predicated region
        $region77: #{tpu_custom_call.1} parent=67 // pred_check
          %p1756 = pneg %p310
        $region78: #{tpu_custom_call.1} parent=67 // pred_check_branch
          %1758 = sbr.rel (%p1756) target = $region80
        $region79: #{tpu_custom_call.1} parent=67 // pred_region
          %s1760 = ssub.s32 512, 512
          %1761 = vsyncadd %s1752, %s1760
          %s1762 = smul.addr %s30, 4
          %s1763 = smul.addr %s1762, 128
          %s1764 = scalar_lea.hbm %s12, %s1763
          %s1765 = sshll.u32 %s1755, 4
          %s1766 = int_to_ptr.vmem [resolvable:$true] %s1765
          %1771 = dma.vmem_to_hbm [thread:$0]  %s1766, 512, %s1764, %s1752, 256, 256, 16
        $region80: #{tpu_custom_call.1} parent=67 // pred_fallthru
          _
      $region68: #{tpu_custom_call.1} parent=5 // pred_fallthru
        _
      %p1772 = scmp.le.s32.totalorder 2, %s25
      // Predicated region
      $region81: #{tpu_custom_call.1} parent=5 // pred_check
        %p1773 = pneg %p1772
      $region82: #{tpu_custom_call.1} parent=5 // pred_check_branch
        %1775 = sbr.rel (%p1773) target = $region84
      $region83: #{tpu_custom_call.1} parent=5 // pred_region
        %s1776 = ssub.s32 %s25, 2
        // Predicated region
        $region85: #{tpu_custom_call.1} parent=83 // pred_check
          %p1777 = pneg %p316
        $region86: #{tpu_custom_call.1} parent=83 // pred_check_branch
          %1779 = sbr.rel (%p1777) target = $region88
        $region87: #{tpu_custom_call.1} parent=83 // pred_region
          %s1780 = sand.u32 %s301, 1
          %s1781 = scalar_lea.sflag [#allocation4], %s1780
          %s1782 = sand.u32 %s301, 1
          %s1783 = smul.addr %s1782, 32
          %s1784 = scalar_lea.vmem [#allocation7], %s1783
          %1785 = dma.done %s1781, 512
        $region88: #{tpu_custom_call.1} parent=83 // pred_fallthru
          _
      $region84: #{tpu_custom_call.1} parent=5 // pred_fallthru
        _
    $region6: #{tpu_custom_call.1} parent=1 // loop_footer
      %s29 = sadd.s32 1, %s25
    $region7: #{tpu_custom_call.1} parent=1 // loop_footer_branch
      %24 = sbr.rel target = $region3
    $region8: #{tpu_custom_call.1} parent=1 // loop_exit
      _
    %1786 = vsyncpa [#allocation3], 1
    %s1787 = scalar_lea.sflag [#allocation3], 1
    %1788 = vsyncpa %s1787, 1
    %1789 = vsyncpa [#allocation6], 1
    %1790 = vsyncpa [#allocation4], 1
    %s1791 = scalar_lea.sflag [#allocation4], 1
    %1792 = vsyncpa %s1791, 1

</llo_original>
